<compile_context>
chip_gen: v5e
topology: v5e:2x2
jax: 0.10.0
libtpu: 0.0.40
codegen_flags: <defaults>
</compile_context>

<pallas_src>
import functools

import jax
import jax.numpy as jnp
from jax.experimental import pallas as pl
from jax.experimental.pallas import tpu as pltpu


# ----------------------------- kernels ------------------------------------ #

def _store_scores_and_finalize(out_ref, scores_b1s, *, ts, seq_len):
    """Store this tile's raw scores (lane-dense); on the last seq step run the
    masked row softmax over the resident (bb, S_pad) accumulator."""
    s_step = pl.program_id(1)
    start = pl.multiple_of(s_step * ts, ts)
    out_ref[:, pl.ds(start, ts)] = scores_b1s[:, 0, :]          # (bb, ts) f32

    @pl.when(s_step == pl.num_programs(1) - 1)
    def _():
        sc = out_ref[...]                                        # (bb, S_pad) f32
        s_pad = out_ref.shape[-1]
        if seq_len != s_pad:                                     # static: mask padding
            col = jax.lax.broadcasted_iota(jnp.int32, sc.shape, 1)
            sc = jnp.where(col < seq_len, sc, jnp.float32(-1e30))
        m = jnp.max(sc, axis=-1, keepdims=True)
        e = jnp.exp(sc - m)
        d = jnp.sum(e, axis=-1, keepdims=True)
        r = pl.reciprocal(d, approx=True)                        # EUP slot
        r = r * (2.0 - d * r)                                    # 1 Newton step -> f32-exact
        out_ref[...] = e * r


def dot_attn_kernel(hidden_ref, enc_ref, out_ref, *, ts, seq_len):
    # enc_ref: (ts, bb, H) tile of the (S, B, H) encoder stream.
    enc = pltpu.einshape('sbh->bsh', enc_ref[...])               # in-VMEM layout fixup
    scores = jnp.einsum('bqh,bsh->bqs', hidden_ref[...], enc,
                        preferred_element_type=jnp.float32)      # (bb, 1, ts)
    _store_scores_and_finalize(out_ref, scores, ts=ts, seq_len=seq_len)


def general_attn_kernel(hidden_ref, enc_ref, w_ref, b_ref, out_ref,
                        hw_ref, hb_ref, *, ts, seq_len):
    @pl.when(pl.program_id(1) == 0)
    def _():
        # hidden @ W once per batch block: O(bb*H^2), never O(S*H^2).
        hw = jnp.einsum('bqo,oi->bqi', hidden_ref[...], w_ref[...],
                        preferred_element_type=jnp.float32)      # (bb, 1, H)
        hw_ref[...] = hw.astype(hw_ref.dtype)
        # hidden.b is constant over s (cancels under softmax); kept for
        # exactness but computed once instead of per step.
        hb_ref[...] = jnp.sum(hidden_ref[...].astype(jnp.float32) * b_ref[...],
                              axis=-1, keepdims=True)            # (bb, 1, 1)

    enc = pltpu.einshape('sbh->bsh', enc_ref[...])               # (bb, ts, H)
    scores = jnp.einsum('bqi,bsi->bqs', hw_ref[...], enc,
                        preferred_element_type=jnp.float32)      # (bb, 1, ts)
    scores = scores + hb_ref[...]
    _store_scores_and_finalize(out_ref, scores, ts=ts, seq_len=seq_len)


def concat_attn_kernel(hidden_ref, enc_ref, w1t_ref, w2t_ref, b_ref, v_ref,
                       out_ref, hid_ref, *, ts, seq_len):
    cdt = enc_ref.dtype

    @pl.when(pl.program_id(1) == 0)
    def _():
        # Hidden half of cat([hidden, enc]) @ W.T + b, once per batch block.
        hid = jnp.einsum('bqi,io->bqo', hidden_ref[...], w1t_ref[...],
                         preferred_element_type=jnp.float32) + b_ref[...]
        hid_ref[...] = hid.astype(hid_ref.dtype)                 # (bb, 1, H)

    enc = pltpu.einshape('sbh->bsh', enc_ref[...])               # (bb, ts, H)
    enc_part = jnp.einsum('bsi,io->bso', enc, w2t_ref[...],
                          preferred_element_type=jnp.float32)    # (bb, ts, H) f32
    # tanh in the compute dtype (bf16 on v6e/v7x halves EUP work + the temp).
    energy = jnp.tanh((hid_ref[...].astype(jnp.float32) + enc_part).astype(cdt))
    v_b = jnp.broadcast_to(v_ref[...], (energy.shape[0], 1, energy.shape[-1]))
    scores = jnp.einsum('bqo,bso->bqs', v_b, energy,
                        preferred_element_type=jnp.float32)      # (bb, 1, ts)
    _store_scores_and_finalize(out_ref, scores, ts=ts, seq_len=seq_len)


# ----------------------------- wrapper ------------------------------------ #

def _vmem_limit_bytes():
    cap = 64 * 1024 * 1024                      # safe fallback (v7x physical)
    try:
        cap = int(pltpu.get_tpu_info().vmem_capacity_bytes)
    except Exception:
        pass
    return int(min(cap * 3 // 4, 96 * 1024 * 1024))


def _pick_batch_tile(batch, cdtype):
    """Batch block: multiple of the sublane pack (8 f32 / 16 bf16) so tiles stay
    dense; >= 2 blocks when divisibility allows so v7x's 2 TCs both get work."""
    sub = 16 if cdtype == jnp.bfloat16 else 8
    if batch > sub and batch % sub == 0:
        return sub
    return batch


def _pick_seq_tile(bb, hidden_size, seq_len, itemsize, is_concat, vmem_limit):
    """Largest multiple-of-256 seq tile whose live (ts, bb, H) blocks fit budget.

    Live blocks per step: 2x double-buffered enc DMA + 1x batch-major copy
    (input dtype); concat adds the f32 enc@W2 accumulation and the tanh temp.
    """
    budget = int(vmem_limit * 0.55)
    per_elem = 3 * itemsize + ((4 + itemsize) if is_concat else 0)
    per_row = max(1, bb * hidden_size * per_elem)
    cap = min(8192, max(256, pl.cdiv(seq_len, 256) * 256))      # don't tile past S
    ts = 256
    while ts * 2 <= cap and (ts * 2) * per_row <= budget:
        ts *= 2
    return ts


def attn_forward(method, hidden, encoder_outputs, params, *, seq_tile=None):
    """hidden: (1, B, H); encoder_outputs: (S, B, H) -> (B, 1, S) attention weights."""
    if method not in ('dot', 'general', 'concat'):
        raise ValueError(method, 'is not an appropriate attention method.')
    _, B, H = hidden.shape
    S = encoder_outputs.shape[0]

    # Compute dtype follows the encoder stream (never upcast bf16 -> f32).
    cdtype = jnp.bfloat16 if encoder_outputs.dtype == jnp.bfloat16 else jnp.float32
    enc = encoder_outputs.astype(cdtype)                          # no-op for f32/bf16
    hidden_b1h = jnp.transpose(hidden, (1, 0, 2)).astype(cdtype)  # tiny (B, 1, H)

    vmem_limit = _vmem_limit_bytes()
    bb = _pick_batch_tile(B, cdtype)
    ts = seq_tile if seq_tile is not None else _pick_seq_tile(
        bb, H, S, jnp.dtype(cdtype).itemsize, method == 'concat', vmem_limit)
    n_s = pl.cdiv(S, ts)
    s_pad = n_s * ts
    n_b = B // bb

    def const_spec(shape):
        nd = len(shape)
        return pl.BlockSpec(shape, lambda b, s, nd=nd: (0,) * nd)

    hidden_spec = pl.BlockSpec((bb, 1, H), lambda b, s: (b, 0, 0))
    enc_spec = pl.BlockSpec((ts, bb, H), lambda b, s: (s, b, 0))  # native (S,B,H) layout
    out_spec = pl.BlockSpec((bb, s_pad), lambda b, s: (b, 0))     # resident over s axis

    if method == 'dot':
        kernel = dot_attn_kernel
        inputs = (hidden_b1h, enc)
        in_specs = [hidden_spec, enc_spec]
        scratch = []
    elif method == 'general':
        kernel = general_attn_kernel
        w = params['w'].astype(cdtype)                            # (H, H), (out, in)
        bias = params['b'].astype(jnp.float32).reshape(1, 1, H)
        inputs = (hidden_b1h, enc, w, bias)
        in_specs = [hidden_spec, enc_spec, const_spec((H, H)), const_spec((1, 1, H))]
        scratch = [pltpu.VMEM((bb, 1, H), cdtype),                # hidden @ W
                   pltpu.VMEM((bb, 1, 1), jnp.float32)]           # hidden . b
    else:  # concat
        kernel = concat_attn_kernel
        w = params['w']                                           # (H, 2H)
        w1t = w[:, :H].T.astype(cdtype)                           # tiny host transposes
        w2t = w[:, H:].T.astype(cdtype)
        bias = params['b'].astype(jnp.float32).reshape(1, 1, H)
        v = params['v'].astype(cdtype).reshape(1, 1, H)
        inputs = (hidden_b1h, enc, w1t, w2t, bias, v)
        in_specs = [hidden_spec, enc_spec, const_spec((H, H)), const_spec((H, H)),
                    const_spec((1, 1, H)), const_spec((1, 1, H))]
        scratch = [pltpu.VMEM((bb, 1, H), cdtype)]                # hidden@W1.T + b

    out = pl.pallas_call(
        functools.partial(kernel, ts=ts, seq_len=S),
        out_shape=jax.ShapeDtypeStruct((B, s_pad), jnp.float32),
        grid_spec=pltpu.PrefetchScalarGridSpec(
            num_scalar_prefetch=0,
            grid=(n_b, n_s),
            in_specs=in_specs,
            out_specs=out_spec,
            scratch_shapes=scratch),
        compiler_params=pltpu.CompilerParams(
            # batch blocks independent (megacore); seq axis revisits the output.
            dimension_semantics=("parallel", "arbitrary"),
            vmem_limit_bytes=vmem_limit),
    )(*inputs)

    if s_pad != S:
        out = out[:, :S]
    return out[:, None, :]                                        # (B, 1, S)


# ----------------------------- reference ----------------------------------- #

def attn_reference(method, hidden, enc, params):
    if method == 'dot':
        scores = jnp.sum(hidden * enc, axis=2)
    elif method == 'general':
        energy = enc @ params['w'].T + params['b']
        scores = jnp.sum(hidden * energy, axis=2)
    else:
        cat = jnp.concatenate([jnp.broadcast_to(hidden, enc.shape), enc], axis=2)
        energy = jnp.tanh(cat @ params['w'].T + params['b'])
        scores = jnp.sum(params['v'] * energy, axis=2)
    scores = scores.T
    return jax.nn.softmax(scores, axis=1)[:, None, :]


# ----------------------------- main ---------------------------------------- #

if __name__ == "__main__":
    B, S, H = 2, 8, 32   # batch, encoder seq length, hidden size (small synthetic)
    key = jax.random.PRNGKey(0)
    k1, k2, k3, k4, k5, k6 = jax.random.split(key, 6)

    hidden = jax.random.normal(k1, (1, B, H), dtype=jnp.float32)
    encoder_outputs = jax.random.normal(k2, (S, B, H), dtype=jnp.float32)

    params_general = {
        'w': 0.1 * jax.random.normal(k3, (H, H), dtype=jnp.float32),
        'b': 0.1 * jax.random.normal(k4, (H,), dtype=jnp.float32),
    }
    params_concat = {
        'w': 0.1 * jax.random.normal(k5, (H, 2 * H), dtype=jnp.float32),
        'b': 0.1 * jax.random.normal(k4, (H,), dtype=jnp.float32),
        'v': jax.random.normal(k6, (H,), dtype=jnp.float32),
    }

    cases = (('dot', {}), ('general', params_general), ('concat', params_concat))

    # float32 path: tight check against the f32 reference.
    for method, params in cases:
        out = jax.block_until_ready(
            attn_forward(method, hidden, encoder_outputs, params))
        assert out.shape == (B, 1, S), (method, out.shape)
        ref = attn_reference(method, hidden, encoder_outputs, params)
        assert jnp.allclose(out, ref, atol=2e-5, rtol=1e-4), f"f32 mismatch: {method}"

    # bfloat16 path (half the HBM bytes / native-rate MXU): checked against the
    # f32 reference evaluated on bf16-rounded inputs with bf16-level tolerance.
    def to_bf16(x):
        return x.astype(jnp.bfloat16)

    def bf16_as_f32(x):
        return x.astype(jnp.bfloat16).astype(jnp.float32)

    for method, params in cases:
        out = jax.block_until_ready(
            attn_forward(method, to_bf16(hidden), to_bf16(encoder_outputs),
                         {k: to_bf16(v) for k, v in params.items()}))
        assert out.shape == (B, 1, S), (method, out.shape)
        ref = attn_reference(method, bf16_as_f32(hidden), bf16_as_f32(encoder_outputs),
                             {k: bf16_as_f32(v) for k, v in params.items()})
        assert jnp.allclose(out, ref, atol=5e-2, rtol=5e-2), f"bf16 mismatch: {method}"

    print("KERNEL_OK")
</pallas_src>

<mosaic_0001>
module attributes {stable_mosaic.version = 11 : i64} {
  func.func @dot_attn_kernel(%arg0: i32, %arg1: i32, %arg2: memref<2x1x32xf32, #tpu.memory_space<vmem>>, %arg3: memref<256x2x32xf32, #tpu.memory_space<vmem>>, %arg4: memref<2x256xf32, #tpu.memory_space<vmem>>) attributes {dimension_semantics = [#tpu.dimension_semantics<parallel>, #tpu.dimension_semantics<arbitrary>], iteration_bounds = array<i64: 1, 1>, scalar_prefetch = 0 : i64, scratch_operands = 0 : i64, tpu.core_type = #tpu.core_type<tc>, window_params = [{transform_indices = @transform_0, window_bounds = array<i64: 2, 1, 32>}, {transform_indices = @transform_1, window_bounds = array<i64: 256, 2, 32>}, {transform_indices = @transform_2, window_bounds = array<i64: 2, 256>}]} {
    %c0 = arith.constant 0 : index
    %c0_0 = arith.constant 0 : index
    %c0_1 = arith.constant 0 : index
    %0 = vector.load %arg3[%c0, %c0_0, %c0_1] : memref<256x2x32xf32, #tpu.memory_space<vmem>>, vector<256x2x32xf32>
    %1 = tpu.transpose %0, [1, 0, 2] : vector<256x2x32xf32> -> vector<2x256x32xf32>
    %c0_2 = arith.constant 0 : index
    %c0_3 = arith.constant 0 : index
    %c0_4 = arith.constant 0 : index
    %2 = vector.load %arg2[%c0_2, %c0_3, %c0_4] : memref<2x1x32xf32, #tpu.memory_space<vmem>>, vector<2x1x32xf32>
    "tpu.trace_start"() <{level = 10 : i32, message = "bqh,bsh->bqs"}> : () -> ()
    %cst = arith.constant dense<0.000000e+00> : vector<2x1x256xf32>
    %3 = tpu.matmul %2, %1, %cst {dimension_numbers = #tpu.dot_dimension_numbers<[2], [2], [1], [1], [0, 0, 0, 1, 1, 1], [0], [0]>} : vector<2x1x32xf32>, vector<2x256x32xf32>, vector<2x1x256xf32> -> vector<2x1x256xf32>
    "tpu.trace_stop"() : () -> ()
    %c256_i32 = arith.constant 256 : i32
    %4 = arith.muli %arg1, %c256_i32 : i32
    %5 = tpu.assume_multiple %4, 256 : i32
    %6 = vector.shape_cast %3 : vector<2x1x256xf32> to vector<2x256xf32>
    %c0_5 = arith.constant 0 : index
    %7 = arith.index_cast %5 : i32 to index
    %8 = vector.load %arg4[%c0_5, %7] : memref<2x256xf32, #tpu.memory_space<vmem>>, vector<2x256xf32>
    tpu.vector_store %arg4[%c0_5, %7], %6 {strides = array<i32>} : memref<2x256xf32, #tpu.memory_space<vmem>>, vector<2x256xf32>,
    %c0_i32 = arith.constant 0 : i32
    %9 = arith.cmpi eq, %arg1, %c0_i32 : i32
    %10 = arith.extui %9 : i1 to i32
    %c0_i32_6 = arith.constant 0 : i32
    %11 = arith.cmpi ne, %10, %c0_i32_6 : i32
    scf.if %11 {
      %c0_7 = arith.constant 0 : index
      %c0_8 = arith.constant 0 : index
      %12 = vector.load %arg4[%c0_7, %c0_8] : memref<2x256xf32, #tpu.memory_space<vmem>>, vector<2x256xf32>
      %13 = tpu.iota {dimensions = array<i32: 1>} : vector<2x256xi32>
      %c8_i32 = arith.constant 8 : i32
      %14 = vector.broadcast %c8_i32 : i32 to vector<2x256xi32>
      %15 = arith.cmpi slt, %13, %14 : vector<2x256xi32>
      %cst_9 = arith.constant -1.000000e+30 : f32
      %16 = vector.broadcast %cst_9 : f32 to vector<2x256xf32>
      %17 = arith.select %15, %12, %16 : vector<2x256xi1>, vector<2x256xf32>
      %cst_10 = arith.constant dense<0xFF800000> : vector<2xf32>
      %18 = vector.multi_reduction <maximumf>, %17, %cst_10 [1] : vector<2x256xf32> to vector<2xf32>
      %19 = vector.shape_cast %18 : vector<2xf32> to vector<2x1xf32>
      %20 = vector.broadcast %19 : vector<2x1xf32> to vector<2x256xf32>
      %21 = arith.subf %17, %20 : vector<2x256xf32>
      %22 = math.exp %21 : vector<2x256xf32>
      %cst_11 = arith.constant dense<0.000000e+00> : vector<2xf32>
      %23 = vector.multi_reduction <add>, %22, %cst_11 [1] : vector<2x256xf32> to vector<2xf32>
      %24 = vector.shape_cast %23 : vector<2xf32> to vector<2x1xf32>
      %25 = tpu.reciprocal %24 {approx = true} : vector<2x1xf32> -> vector<2x1xf32>
      %26 = arith.mulf %24, %25 : vector<2x1xf32>
      %cst_12 = arith.constant 2.000000e+00 : f32
      %27 = vector.broadcast %cst_12 : f32 to vector<2x1xf32>
      %28 = arith.subf %27, %26 : vector<2x1xf32>
      %29 = arith.mulf %25, %28 : vector<2x1xf32>
      %30 = vector.broadcast %29 : vector<2x1xf32> to vector<2x256xf32>
      %31 = arith.mulf %22, %30 : vector<2x256xf32>
      %c0_13 = arith.constant 0 : index
      %c0_14 = arith.constant 0 : index
      %32 = vector.load %arg4[%c0_13, %c0_14] : memref<2x256xf32, #tpu.memory_space<vmem>>, vector<2x256xf32>
      tpu.vector_store %arg4[%c0_13, %c0_14], %31 {strides = array<i32>} : memref<2x256xf32, #tpu.memory_space<vmem>>, vector<2x256xf32>,
    } else {
    }
    return
  }
  func.func @transform_0(%arg0: i32, %arg1: i32) -> (i32, i32, i32) {
    %c0_i32 = arith.constant 0 : i32
    %c0_i32_0 = arith.constant 0 : i32
    %c0_i32_1 = arith.constant 0 : i32
    return %arg0, %c0_i32, %c0_i32_0 : i32, i32, i32
  }
  func.func @transform_1(%arg0: i32, %arg1: i32) -> (i32, i32, i32) {
    %c0_i32 = arith.constant 0 : i32
    %c0_i32_0 = arith.constant 0 : i32
    return %arg1, %arg0, %c0_i32 : i32, i32, i32
  }
  func.func @transform_2(%arg0: i32, %arg1: i32) -> (i32, i32) {
    %c0_i32 = arith.constant 0 : i32
    %c0_i32_0 = arith.constant 0 : i32
    return %arg0, %c0_i32 : i32, i32
  }
}

</mosaic_0001>

<llo_original>
// kernel: tpu_custom_call.1
$region0: #{tpu_custom_call.1}
  #allocation0 [shape = 'u32[]', space=smem, size = 0x4, offset = 0x4, fixed_abs, tag = 'smem constant byte address 0x4 - core index']
  #allocation1 [shape = 'u32[72,128]{1,0:T(1,128)}', space=vmem, size = 0x9000, scoped, tag = 'internal scratch']
  %s0 = inlined_call_operand.hbm [shape: f32[2,1,32], index: 0, kind: input, shape index: {}]
  %s1 = inlined_call_operand.hbm [shape: f32[8,2,32], index: 1, kind: input, shape index: {}]
  %s2 = inlined_call_operand.hbm [shape: f32[2,256], index: 2, kind: output, shape index: {}]
  %s3 = sld [smem:[#allocation0]]
  $region30: #{tpu_custom_call.1} parent=0
    _
  %s5 = ssub.s32 1, %s3
  %s6 = scalar_select 0, %s5, %s3
  $region1: #{tpu_custom_call.1} parent=0
    #allocation2 [shape = 'u8[1024]{0}', space=vmem, size = 0x400, scoped, tag = 'input window, operand 0, single buffered']
    #allocation3 [shape = 's32[1]{0}', space=sflag, size = 0x4, scoped, tag = 'scoped memory for tpu_custom_call.1']
    #allocation4 [shape = 's32[1]{0}', space=sflag, size = 0x4, scoped, tag = 'scoped memory for tpu_custom_call.1']
    #allocation5 [shape = 'u8[262144]{0}', space=vmem, size = 0x40000, scoped, tag = 'input window, operand 1, single buffered']
    #allocation6 [shape = 's32[1]{0}', space=sflag, size = 0x4, scoped, tag = 'scoped memory for tpu_custom_call.1']
    #allocation7 [shape = 'u8[2048]{0}', space=vmem, size = 0x800, scoped, tag = 'output window, operand 0, single buffered']
    %7 = vsyncpa [#allocation3], 0
    %8 = vsyncpa [#allocation6], 0
    %9 = vsyncpa [#allocation4], 0
    // Predicated region
    $region2: #{tpu_custom_call.1} parent=1 // pred_check
      _
    $region3: #{tpu_custom_call.1} parent=1 // pred_check_branch
      %11 = sbr.rel (0) target = $region5
    $region4: #{tpu_custom_call.1} parent=1 // pred_region
      %13 = vsyncadd [#allocation3], 0
      %s14 = sshll.u32 %s0, 4
      %s15 = int_to_ptr.hbm [resolvable:$true] %s14
      %s16 = sshll.u32 [#allocation2], 4
      %s17 = int_to_ptr.vmem [resolvable:$true] %s16
      %22 = dma.hbm_to_vmem [thread:$0]  %s15, 32, %s17, [#allocation3], 16, 16, 1
    $region5: #{tpu_custom_call.1} parent=1 // pred_fallthru
      _
    // Predicated region
    $region6: #{tpu_custom_call.1} parent=1 // pred_check
      _
    $region7: #{tpu_custom_call.1} parent=1 // pred_check_branch
      %24 = sbr.rel (0) target = $region9
    $region8: #{tpu_custom_call.1} parent=1 // pred_region
      %26 = vsyncadd [#allocation6], 7936
      %s27 = sshll.u32 %s1, 4
      %s28 = int_to_ptr.hbm [resolvable:$true] %s27
      %s29 = sshll.u32 [#allocation5], 4
      %s30 = int_to_ptr.vmem [resolvable:$true] %s29
      %35 = dma.hbm_to_vmem [thread:$0]  %s28, 256, %s30, [#allocation6], 32, 32, 2
    $region9: #{tpu_custom_call.1} parent=1 // pred_fallthru
      _
    // Predicated region
    $region10: #{tpu_custom_call.1} parent=1 // pred_check
      _
    $region11: #{tpu_custom_call.1} parent=1 // pred_check_branch
      %37 = sbr.rel (0) target = $region13
    $region12: #{tpu_custom_call.1} parent=1 // pred_region
      %39 = dma.done [#allocation3], 32
    $region13: #{tpu_custom_call.1} parent=1 // pred_fallthru
      _
    // Predicated region
    $region14: #{tpu_custom_call.1} parent=1 // pred_check
      _
    $region15: #{tpu_custom_call.1} parent=1 // pred_check_branch
      %41 = sbr.rel (0) target = $region17
    $region16: #{tpu_custom_call.1} parent=1 // pred_region
      %43 = dma.done [#allocation6], 8192
    $region17: #{tpu_custom_call.1} parent=1 // pred_fallthru
      _
    %v44 = vld [vmem:[#allocation5] sm:$0x3]
    %v45 = vld [vmem:[#allocation5 + $0x2] sm:$0x3]
    %v46 = vld [vmem:[#allocation5 + $0x4] sm:$0x3]
    %v47 = vld [vmem:[#allocation5 + $0x6] sm:$0x3]
    %v48 = vld [vmem:[#allocation5 + $0x8] sm:$0x3]
    %v49 = vld [vmem:[#allocation5 + $0xa] sm:$0x3]
    %v50 = vld [vmem:[#allocation5 + $0xc] sm:$0x3]
    %v51 = vld [vmem:[#allocation5 + $0xe] sm:$0x3]
    %v52 = vld [vmem:[#allocation5 + $0x10] sm:$0x3]
    %v53 = vld [vmem:[#allocation5 + $0x12] sm:$0x3]
    %v54 = vld [vmem:[#allocation5 + $0x14] sm:$0x3]
    %v55 = vld [vmem:[#allocation5 + $0x16] sm:$0x3]
    %v56 = vld [vmem:[#allocation5 + $0x18] sm:$0x3]
    %v57 = vld [vmem:[#allocation5 + $0x1a] sm:$0x3]
    %v58 = vld [vmem:[#allocation5 + $0x1c] sm:$0x3]
    %v59 = vld [vmem:[#allocation5 + $0x1e] sm:$0x3]
    %v60 = vld [vmem:[#allocation5 + $0x20] sm:$0x3]
    %v61 = vld [vmem:[#allocation5 + $0x22] sm:$0x3]
    %v62 = vld [vmem:[#allocation5 + $0x24] sm:$0x3]
    %v63 = vld [vmem:[#allocation5 + $0x26] sm:$0x3]
    %v64 = vld [vmem:[#allocation5 + $0x28] sm:$0x3]
    %v65 = vld [vmem:[#allocation5 + $0x2a] sm:$0x3]
    %v66 = vld [vmem:[#allocation5 + $0x2c] sm:$0x3]
    %v67 = vld [vmem:[#allocation5 + $0x2e] sm:$0x3]
    %v68 = vld [vmem:[#allocation5 + $0x30] sm:$0x3]
    %v69 = vld [vmem:[#allocation5 + $0x32] sm:$0x3]
    %v70 = vld [vmem:[#allocation5 + $0x34] sm:$0x3]
    %v71 = vld [vmem:[#allocation5 + $0x36] sm:$0x3]
    %v72 = vld [vmem:[#allocation5 + $0x38] sm:$0x3]
    %v73 = vld [vmem:[#allocation5 + $0x3a] sm:$0x3]
    %v74 = vld [vmem:[#allocation5 + $0x3c] sm:$0x3]
    %v75 = vld [vmem:[#allocation5 + $0x3e] sm:$0x3]
    %v76 = vld [vmem:[#allocation5 + $0x40] sm:$0x3]
    %v77 = vld [vmem:[#allocation5 + $0x42] sm:$0x3]
    %v78 = vld [vmem:[#allocation5 + $0x44] sm:$0x3]
    %v79 = vld [vmem:[#allocation5 + $0x46] sm:$0x3]
    %v80 = vld [vmem:[#allocation5 + $0x48] sm:$0x3]
    %v81 = vld [vmem:[#allocation5 + $0x4a] sm:$0x3]
    %v82 = vld [vmem:[#allocation5 + $0x4c] sm:$0x3]
    %v83 = vld [vmem:[#allocation5 + $0x4e] sm:$0x3]
    %v84 = vld [vmem:[#allocation5 + $0x50] sm:$0x3]
    %v85 = vld [vmem:[#allocation5 + $0x52] sm:$0x3]
    %v86 = vld [vmem:[#allocation5 + $0x54] sm:$0x3]
    %v87 = vld [vmem:[#allocation5 + $0x56] sm:$0x3]
    %v88 = vld [vmem:[#allocation5 + $0x58] sm:$0x3]
    %v89 = vld [vmem:[#allocation5 + $0x5a] sm:$0x3]
    %v90 = vld [vmem:[#allocation5 + $0x5c] sm:$0x3]
    %v91 = vld [vmem:[#allocation5 + $0x5e] sm:$0x3]
    %v92 = vld [vmem:[#allocation5 + $0x60] sm:$0x3]
    %v93 = vld [vmem:[#allocation5 + $0x62] sm:$0x3]
    %v94 = vld [vmem:[#allocation5 + $0x64] sm:$0x3]
    %v95 = vld [vmem:[#allocation5 + $0x66] sm:$0x3]
    %v96 = vld [vmem:[#allocation5 + $0x68] sm:$0x3]
    %v97 = vld [vmem:[#allocation5 + $0x6a] sm:$0x3]
    %v98 = vld [vmem:[#allocation5 + $0x6c] sm:$0x3]
    %v99 = vld [vmem:[#allocation5 + $0x6e] sm:$0x3]
    %v100 = vld [vmem:[#allocation5 + $0x70] sm:$0x3]
    %v101 = vld [vmem:[#allocation5 + $0x72] sm:$0x3]
    %v102 = vld [vmem:[#allocation5 + $0x74] sm:$0x3]
    %v103 = vld [vmem:[#allocation5 + $0x76] sm:$0x3]
    %v104 = vld [vmem:[#allocation5 + $0x78] sm:$0x3]
    %v105 = vld [vmem:[#allocation5 + $0x7a] sm:$0x3]
    %v106 = vld [vmem:[#allocation5 + $0x7c] sm:$0x3]
    %v107 = vld [vmem:[#allocation5 + $0x7e] sm:$0x3]
    %v108 = vld [vmem:[#allocation5 + $0x80] sm:$0x3]
    %v109 = vld [vmem:[#allocation5 + $0x82] sm:$0x3]
    %v110 = vld [vmem:[#allocation5 + $0x84] sm:$0x3]
    %v111 = vld [vmem:[#allocation5 + $0x86] sm:$0x3]
    %v112 = vld [vmem:[#allocation5 + $0x88] sm:$0x3]
    %v113 = vld [vmem:[#allocation5 + $0x8a] sm:$0x3]
    %v114 = vld [vmem:[#allocation5 + $0x8c] sm:$0x3]
    %v115 = vld [vmem:[#allocation5 + $0x8e] sm:$0x3]
    %v116 = vld [vmem:[#allocation5 + $0x90] sm:$0x3]
    %v117 = vld [vmem:[#allocation5 + $0x92] sm:$0x3]
    %v118 = vld [vmem:[#allocation5 + $0x94] sm:$0x3]
    %v119 = vld [vmem:[#allocation5 + $0x96] sm:$0x3]
    %v120 = vld [vmem:[#allocation5 + $0x98] sm:$0x3]
    %v121 = vld [vmem:[#allocation5 + $0x9a] sm:$0x3]
    %v122 = vld [vmem:[#allocation5 + $0x9c] sm:$0x3]
    %v123 = vld [vmem:[#allocation5 + $0x9e] sm:$0x3]
    %v124 = vld [vmem:[#allocation5 + $0xa0] sm:$0x3]
    %v125 = vld [vmem:[#allocation5 + $0xa2] sm:$0x3]
    %v126 = vld [vmem:[#allocation5 + $0xa4] sm:$0x3]
    %v127 = vld [vmem:[#allocation5 + $0xa6] sm:$0x3]
    %v128 = vld [vmem:[#allocation5 + $0xa8] sm:$0x3]
    %v129 = vld [vmem:[#allocation5 + $0xaa] sm:$0x3]
    %v130 = vld [vmem:[#allocation5 + $0xac] sm:$0x3]
    %v131 = vld [vmem:[#allocation5 + $0xae] sm:$0x3]
    %v132 = vld [vmem:[#allocation5 + $0xb0] sm:$0x3]
    %v133 = vld [vmem:[#allocation5 + $0xb2] sm:$0x3]
    %v134 = vld [vmem:[#allocation5 + $0xb4] sm:$0x3]
    %v135 = vld [vmem:[#allocation5 + $0xb6] sm:$0x3]
    %v136 = vld [vmem:[#allocation5 + $0xb8] sm:$0x3]
    %v137 = vld [vmem:[#allocation5 + $0xba] sm:$0x3]
    %v138 = vld [vmem:[#allocation5 + $0xbc] sm:$0x3]
    %v139 = vld [vmem:[#allocation5 + $0xbe] sm:$0x3]
    %v140 = vld [vmem:[#allocation5 + $0xc0] sm:$0x3]
    %v141 = vld [vmem:[#allocation5 + $0xc2] sm:$0x3]
    %v142 = vld [vmem:[#allocation5 + $0xc4] sm:$0x3]
    %v143 = vld [vmem:[#allocation5 + $0xc6] sm:$0x3]
    %v144 = vld [vmem:[#allocation5 + $0xc8] sm:$0x3]
    %v145 = vld [vmem:[#allocation5 + $0xca] sm:$0x3]
    %v146 = vld [vmem:[#allocation5 + $0xcc] sm:$0x3]
    %v147 = vld [vmem:[#allocation5 + $0xce] sm:$0x3]
    %v148 = vld [vmem:[#allocation5 + $0xd0] sm:$0x3]
    %v149 = vld [vmem:[#allocation5 + $0xd2] sm:$0x3]
    %v150 = vld [vmem:[#allocation5 + $0xd4] sm:$0x3]
    %v151 = vld [vmem:[#allocation5 + $0xd6] sm:$0x3]
    %v152 = vld [vmem:[#allocation5 + $0xd8] sm:$0x3]
    %v153 = vld [vmem:[#allocation5 + $0xda] sm:$0x3]
    %v154 = vld [vmem:[#allocation5 + $0xdc] sm:$0x3]
    %v155 = vld [vmem:[#allocation5 + $0xde] sm:$0x3]
    %v156 = vld [vmem:[#allocation5 + $0xe0] sm:$0x3]
    %v157 = vld [vmem:[#allocation5 + $0xe2] sm:$0x3]
    %v158 = vld [vmem:[#allocation5 + $0xe4] sm:$0x3]
    %v159 = vld [vmem:[#allocation5 + $0xe6] sm:$0x3]
    %v160 = vld [vmem:[#allocation5 + $0xe8] sm:$0x3]
    %v161 = vld [vmem:[#allocation5 + $0xea] sm:$0x3]
    %v162 = vld [vmem:[#allocation5 + $0xec] sm:$0x3]
    %v163 = vld [vmem:[#allocation5 + $0xee] sm:$0x3]
    %v164 = vld [vmem:[#allocation5 + $0xf0] sm:$0x3]
    %v165 = vld [vmem:[#allocation5 + $0xf2] sm:$0x3]
    %v166 = vld [vmem:[#allocation5 + $0xf4] sm:$0x3]
    %v167 = vld [vmem:[#allocation5 + $0xf6] sm:$0x3]
    %v168 = vld [vmem:[#allocation5 + $0xf8] sm:$0x3]
    %v169 = vld [vmem:[#allocation5 + $0xfa] sm:$0x3]
    %v170 = vld [vmem:[#allocation5 + $0xfc] sm:$0x3]
    %v171 = vld [vmem:[#allocation5 + $0xfe] sm:$0x3]
    %v172 = vld [vmem:[#allocation5 + $0x100] sm:$0x3]
    %v173 = vld [vmem:[#allocation5 + $0x102] sm:$0x3]
    %v174 = vld [vmem:[#allocation5 + $0x104] sm:$0x3]
    %v175 = vld [vmem:[#allocation5 + $0x106] sm:$0x3]
    %v176 = vld [vmem:[#allocation5 + $0x108] sm:$0x3]
    %v177 = vld [vmem:[#allocation5 + $0x10a] sm:$0x3]
    %v178 = vld [vmem:[#allocation5 + $0x10c] sm:$0x3]
    %v179 = vld [vmem:[#allocation5 + $0x10e] sm:$0x3]
    %v180 = vld [vmem:[#allocation5 + $0x110] sm:$0x3]
    %v181 = vld [vmem:[#allocation5 + $0x112] sm:$0x3]
    %v182 = vld [vmem:[#allocation5 + $0x114] sm:$0x3]
    %v183 = vld [vmem:[#allocation5 + $0x116] sm:$0x3]
    %v184 = vld [vmem:[#allocation5 + $0x118] sm:$0x3]
    %v185 = vld [vmem:[#allocation5 + $0x11a] sm:$0x3]
    %v186 = vld [vmem:[#allocation5 + $0x11c] sm:$0x3]
    %v187 = vld [vmem:[#allocation5 + $0x11e] sm:$0x3]
    %v188 = vld [vmem:[#allocation5 + $0x120] sm:$0x3]
    %v189 = vld [vmem:[#allocation5 + $0x122] sm:$0x3]
    %v190 = vld [vmem:[#allocation5 + $0x124] sm:$0x3]
    %v191 = vld [vmem:[#allocation5 + $0x126] sm:$0x3]
    %v192 = vld [vmem:[#allocation5 + $0x128] sm:$0x3]
    %v193 = vld [vmem:[#allocation5 + $0x12a] sm:$0x3]
    %v194 = vld [vmem:[#allocation5 + $0x12c] sm:$0x3]
    %v195 = vld [vmem:[#allocation5 + $0x12e] sm:$0x3]
    %v196 = vld [vmem:[#allocation5 + $0x130] sm:$0x3]
    %v197 = vld [vmem:[#allocation5 + $0x132] sm:$0x3]
    %v198 = vld [vmem:[#allocation5 + $0x134] sm:$0x3]
    %v199 = vld [vmem:[#allocation5 + $0x136] sm:$0x3]
    %v200 = vld [vmem:[#allocation5 + $0x138] sm:$0x3]
    %v201 = vld [vmem:[#allocation5 + $0x13a] sm:$0x3]
    %v202 = vld [vmem:[#allocation5 + $0x13c] sm:$0x3]
    %v203 = vld [vmem:[#allocation5 + $0x13e] sm:$0x3]
    %v204 = vld [vmem:[#allocation5 + $0x140] sm:$0x3]
    %v205 = vld [vmem:[#allocation5 + $0x142] sm:$0x3]
    %v206 = vld [vmem:[#allocation5 + $0x144] sm:$0x3]
    %v207 = vld [vmem:[#allocation5 + $0x146] sm:$0x3]
    %v208 = vld [vmem:[#allocation5 + $0x148] sm:$0x3]
    %v209 = vld [vmem:[#allocation5 + $0x14a] sm:$0x3]
    %v210 = vld [vmem:[#allocation5 + $0x14c] sm:$0x3]
    %v211 = vld [vmem:[#allocation5 + $0x14e] sm:$0x3]
    %v212 = vld [vmem:[#allocation5 + $0x150] sm:$0x3]
    %v213 = vld [vmem:[#allocation5 + $0x152] sm:$0x3]
    %v214 = vld [vmem:[#allocation5 + $0x154] sm:$0x3]
    %v215 = vld [vmem:[#allocation5 + $0x156] sm:$0x3]
    %v216 = vld [vmem:[#allocation5 + $0x158] sm:$0x3]
    %v217 = vld [vmem:[#allocation5 + $0x15a] sm:$0x3]
    %v218 = vld [vmem:[#allocation5 + $0x15c] sm:$0x3]
    %v219 = vld [vmem:[#allocation5 + $0x15e] sm:$0x3]
    %v220 = vld [vmem:[#allocation5 + $0x160] sm:$0x3]
    %v221 = vld [vmem:[#allocation5 + $0x162] sm:$0x3]
    %v222 = vld [vmem:[#allocation5 + $0x164] sm:$0x3]
    %v223 = vld [vmem:[#allocation5 + $0x166] sm:$0x3]
    %v224 = vld [vmem:[#allocation5 + $0x168] sm:$0x3]
    %v225 = vld [vmem:[#allocation5 + $0x16a] sm:$0x3]
    %v226 = vld [vmem:[#allocation5 + $0x16c] sm:$0x3]
    %v227 = vld [vmem:[#allocation5 + $0x16e] sm:$0x3]
    %v228 = vld [vmem:[#allocation5 + $0x170] sm:$0x3]
    %v229 = vld [vmem:[#allocation5 + $0x172] sm:$0x3]
    %v230 = vld [vmem:[#allocation5 + $0x174] sm:$0x3]
    %v231 = vld [vmem:[#allocation5 + $0x176] sm:$0x3]
    %v232 = vld [vmem:[#allocation5 + $0x178] sm:$0x3]
    %v233 = vld [vmem:[#allocation5 + $0x17a] sm:$0x3]
    %v234 = vld [vmem:[#allocation5 + $0x17c] sm:$0x3]
    %v235 = vld [vmem:[#allocation5 + $0x17e] sm:$0x3]
    %v236 = vld [vmem:[#allocation5 + $0x180] sm:$0x3]
    %v237 = vld [vmem:[#allocation5 + $0x182] sm:$0x3]
    %v238 = vld [vmem:[#allocation5 + $0x184] sm:$0x3]
    %v239 = vld [vmem:[#allocation5 + $0x186] sm:$0x3]
    %v240 = vld [vmem:[#allocation5 + $0x188] sm:$0x3]
    %v241 = vld [vmem:[#allocation5 + $0x18a] sm:$0x3]
    %v242 = vld [vmem:[#allocation5 + $0x18c] sm:$0x3]
    %v243 = vld [vmem:[#allocation5 + $0x18e] sm:$0x3]
    %v244 = vld [vmem:[#allocation5 + $0x190] sm:$0x3]
    %v245 = vld [vmem:[#allocation5 + $0x192] sm:$0x3]
    %v246 = vld [vmem:[#allocation5 + $0x194] sm:$0x3]
    %v247 = vld [vmem:[#allocation5 + $0x196] sm:$0x3]
    %v248 = vld [vmem:[#allocation5 + $0x198] sm:$0x3]
    %v249 = vld [vmem:[#allocation5 + $0x19a] sm:$0x3]
    %v250 = vld [vmem:[#allocation5 + $0x19c] sm:$0x3]
    %v251 = vld [vmem:[#allocation5 + $0x19e] sm:$0x3]
    %v252 = vld [vmem:[#allocation5 + $0x1a0] sm:$0x3]
    %v253 = vld [vmem:[#allocation5 + $0x1a2] sm:$0x3]
    %v254 = vld [vmem:[#allocation5 + $0x1a4] sm:$0x3]
    %v255 = vld [vmem:[#allocation5 + $0x1a6] sm:$0x3]
    %v256 = vld [vmem:[#allocation5 + $0x1a8] sm:$0x3]
    %v257 = vld [vmem:[#allocation5 + $0x1aa] sm:$0x3]
    %v258 = vld [vmem:[#allocation5 + $0x1ac] sm:$0x3]
    %v259 = vld [vmem:[#allocation5 + $0x1ae] sm:$0x3]
    %v260 = vld [vmem:[#allocation5 + $0x1b0] sm:$0x3]
    %v261 = vld [vmem:[#allocation5 + $0x1b2] sm:$0x3]
    %v262 = vld [vmem:[#allocation5 + $0x1b4] sm:$0x3]
    %v263 = vld [vmem:[#allocation5 + $0x1b6] sm:$0x3]
    %v264 = vld [vmem:[#allocation5 + $0x1b8] sm:$0x3]
    %v265 = vld [vmem:[#allocation5 + $0x1ba] sm:$0x3]
    %v266 = vld [vmem:[#allocation5 + $0x1bc] sm:$0x3]
    %v267 = vld [vmem:[#allocation5 + $0x1be] sm:$0x3]
    %v268 = vld [vmem:[#allocation5 + $0x1c0] sm:$0x3]
    %v269 = vld [vmem:[#allocation5 + $0x1c2] sm:$0x3]
    %v270 = vld [vmem:[#allocation5 + $0x1c4] sm:$0x3]
    %v271 = vld [vmem:[#allocation5 + $0x1c6] sm:$0x3]
    %v272 = vld [vmem:[#allocation5 + $0x1c8] sm:$0x3]
    %v273 = vld [vmem:[#allocation5 + $0x1ca] sm:$0x3]
    %v274 = vld [vmem:[#allocation5 + $0x1cc] sm:$0x3]
    %v275 = vld [vmem:[#allocation5 + $0x1ce] sm:$0x3]
    %v276 = vld [vmem:[#allocation5 + $0x1d0] sm:$0x3]
    %v277 = vld [vmem:[#allocation5 + $0x1d2] sm:$0x3]
    %v278 = vld [vmem:[#allocation5 + $0x1d4] sm:$0x3]
    %v279 = vld [vmem:[#allocation5 + $0x1d6] sm:$0x3]
    %v280 = vld [vmem:[#allocation5 + $0x1d8] sm:$0x3]
    %v281 = vld [vmem:[#allocation5 + $0x1da] sm:$0x3]
    %v282 = vld [vmem:[#allocation5 + $0x1dc] sm:$0x3]
    %v283 = vld [vmem:[#allocation5 + $0x1de] sm:$0x3]
    %v284 = vld [vmem:[#allocation5 + $0x1e0] sm:$0x3]
    %v285 = vld [vmem:[#allocation5 + $0x1e2] sm:$0x3]
    %v286 = vld [vmem:[#allocation5 + $0x1e4] sm:$0x3]
    %v287 = vld [vmem:[#allocation5 + $0x1e6] sm:$0x3]
    %v288 = vld [vmem:[#allocation5 + $0x1e8] sm:$0x3]
    %v289 = vld [vmem:[#allocation5 + $0x1ea] sm:$0x3]
    %v290 = vld [vmem:[#allocation5 + $0x1ec] sm:$0x3]
    %v291 = vld [vmem:[#allocation5 + $0x1ee] sm:$0x3]
    %v292 = vld [vmem:[#allocation5 + $0x1f0] sm:$0x3]
    %v293 = vld [vmem:[#allocation5 + $0x1f2] sm:$0x3]
    %v294 = vld [vmem:[#allocation5 + $0x1f4] sm:$0x3]
    %v295 = vld [vmem:[#allocation5 + $0x1f6] sm:$0x3]
    %v296 = vld [vmem:[#allocation5 + $0x1f8] sm:$0x3]
    %v297 = vld [vmem:[#allocation5 + $0x1fa] sm:$0x3]
    %v298 = vld [vmem:[#allocation5 + $0x1fc] sm:$0x3]
    %v299 = vld [vmem:[#allocation5 + $0x1fe] sm:$0x3]
    %v300 = vrot.slane %v46, 4
    %vm301 = vcmask 1047556
    %v302 = vsel %vm301, %v300, %v44
    %v304 = vunpack.c.l.s4 1983009808
    %v305 = vunpack.c.0.s8 %v304
    %v306 = vperm.slane %v302, %v305
    %v307 = vrot.slane %v47, 4
    %v308 = vsel %vm301, %v307, %v45
    %v310 = vunpack.c.l.s4 1983009808
    %v311 = vunpack.c.0.s8 %v310
    %v312 = vperm.slane %v308, %v311
    %v313 = vrot.slane %v50, 4
    %v314 = vsel %vm301, %v313, %v48
    %v316 = vunpack.c.l.s4 1983009808
    %v317 = vunpack.c.0.s8 %v316
    %v318 = vperm.slane %v314, %v317
    %v319 = vrot.slane %v51, 4
    %v320 = vsel %vm301, %v319, %v49
    %v322 = vunpack.c.l.s4 1983009808
    %v323 = vunpack.c.0.s8 %v322
    %v324 = vperm.slane %v320, %v323
    %v325 = vrot.slane %v312, 4
    %v326 = vsel %vm301, %v325, %v306
    %v328 = vunpack.c.l.s4 1934713408
    %v329 = vunpack.c.0.s8 %v328
    %v330 = vperm.slane %v326, %v329
    %v331 = vrot.slane %v324, 4
    %v332 = vsel %vm301, %v331, %v318
    %v334 = vunpack.c.l.s4 1934713408
    %v335 = vunpack.c.0.s8 %v334
    %v336 = vperm.slane %v332, %v335
    %v337 = vrot.slane %v336, 4
    %v338 = vsel %vm301, %v337, %v330
    %v339 = vrot.slane %v330, 4
    %v340 = vsel %vm301, %v336, %v339
    %v341 = vrot.slane %v54, 4
    %v342 = vsel %vm301, %v341, %v52
    %v344 = vunpack.c.l.s4 1983009808
    %v345 = vunpack.c.0.s8 %v344
    %v346 = vperm.slane %v342, %v345
    %v347 = vrot.slane %v55, 4
    %v348 = vsel %vm301, %v347, %v53
    %v350 = vunpack.c.l.s4 1983009808
    %v351 = vunpack.c.0.s8 %v350
    %v352 = vperm.slane %v348, %v351
    %v353 = vrot.slane %v58, 4
    %v354 = vsel %vm301, %v353, %v56
    %v356 = vunpack.c.l.s4 1983009808
    %v357 = vunpack.c.0.s8 %v356
    %v358 = vperm.slane %v354, %v357
    %v359 = vrot.slane %v59, 4
    %v360 = vsel %vm301, %v359, %v57
    %v362 = vunpack.c.l.s4 1983009808
    %v363 = vunpack.c.0.s8 %v362
    %v364 = vperm.slane %v360, %v363
    %v365 = vrot.slane %v352, 4
    %v366 = vsel %vm301, %v365, %v346
    %v368 = vunpack.c.l.s4 1934713408
    %v369 = vunpack.c.0.s8 %v368
    %v370 = vperm.slane %v366, %v369
    %v371 = vrot.slane %v364, 4
    %v372 = vsel %vm301, %v371, %v358
    %v374 = vunpack.c.l.s4 1934713408
    %v375 = vunpack.c.0.s8 %v374
    %v376 = vperm.slane %v372, %v375
    %v377 = vrot.slane %v376, 4
    %v378 = vsel %vm301, %v377, %v370
    %v379 = vrot.slane %v370, 4
    %v380 = vsel %vm301, %v376, %v379
    %v381 = vrot.slane %v62, 4
    %v382 = vsel %vm301, %v381, %v60
    %v384 = vunpack.c.l.s4 1983009808
    %v385 = vunpack.c.0.s8 %v384
    %v386 = vperm.slane %v382, %v385
    %v387 = vrot.slane %v63, 4
    %v388 = vsel %vm301, %v387, %v61
    %v390 = vunpack.c.l.s4 1983009808
    %v391 = vunpack.c.0.s8 %v390
    %v392 = vperm.slane %v388, %v391
    %v393 = vrot.slane %v66, 4
    %v394 = vsel %vm301, %v393, %v64
    %v396 = vunpack.c.l.s4 1983009808
    %v397 = vunpack.c.0.s8 %v396
    %v398 = vperm.slane %v394, %v397
    %v399 = vrot.slane %v67, 4
    %v400 = vsel %vm301, %v399, %v65
    %v402 = vunpack.c.l.s4 1983009808
    %v403 = vunpack.c.0.s8 %v402
    %v404 = vperm.slane %v400, %v403
    %v405 = vrot.slane %v392, 4
    %v406 = vsel %vm301, %v405, %v386
    %v408 = vunpack.c.l.s4 1934713408
    %v409 = vunpack.c.0.s8 %v408
    %v410 = vperm.slane %v406, %v409
    %v411 = vrot.slane %v404, 4
    %v412 = vsel %vm301, %v411, %v398
    %v414 = vunpack.c.l.s4 1934713408
    %v415 = vunpack.c.0.s8 %v414
    %v416 = vperm.slane %v412, %v415
    %v417 = vrot.slane %v416, 4
    %v418 = vsel %vm301, %v417, %v410
    %v419 = vrot.slane %v410, 4
    %v420 = vsel %vm301, %v416, %v419
    %v421 = vrot.slane %v70, 4
    %v422 = vsel %vm301, %v421, %v68
    %v424 = vunpack.c.l.s4 1983009808
    %v425 = vunpack.c.0.s8 %v424
    %v426 = vperm.slane %v422, %v425
    %v427 = vrot.slane %v71, 4
    %v428 = vsel %vm301, %v427, %v69
    %v430 = vunpack.c.l.s4 1983009808
    %v431 = vunpack.c.0.s8 %v430
    %v432 = vperm.slane %v428, %v431
    %v433 = vrot.slane %v74, 4
    %v434 = vsel %vm301, %v433, %v72
    %v436 = vunpack.c.l.s4 1983009808
    %v437 = vunpack.c.0.s8 %v436
    %v438 = vperm.slane %v434, %v437
    %v439 = vrot.slane %v75, 4
    %v440 = vsel %vm301, %v439, %v73
    %v442 = vunpack.c.l.s4 1983009808
    %v443 = vunpack.c.0.s8 %v442
    %v444 = vperm.slane %v440, %v443
    %v445 = vrot.slane %v432, 4
    %v446 = vsel %vm301, %v445, %v426
    %v448 = vunpack.c.l.s4 1934713408
    %v449 = vunpack.c.0.s8 %v448
    %v450 = vperm.slane %v446, %v449
    %v451 = vrot.slane %v444, 4
    %v452 = vsel %vm301, %v451, %v438
    %v454 = vunpack.c.l.s4 1934713408
    %v455 = vunpack.c.0.s8 %v454
    %v456 = vperm.slane %v452, %v455
    %v457 = vrot.slane %v456, 4
    %v458 = vsel %vm301, %v457, %v450
    %v459 = vrot.slane %v450, 4
    %v460 = vsel %vm301, %v456, %v459
    %v461 = vrot.slane %v78, 4
    %v462 = vsel %vm301, %v461, %v76
    %v464 = vunpack.c.l.s4 1983009808
    %v465 = vunpack.c.0.s8 %v464
    %v466 = vperm.slane %v462, %v465
    %v467 = vrot.slane %v79, 4
    %v468 = vsel %vm301, %v467, %v77
    %v470 = vunpack.c.l.s4 1983009808
    %v471 = vunpack.c.0.s8 %v470
    %v472 = vperm.slane %v468, %v471
    %v473 = vrot.slane %v82, 4
    %v474 = vsel %vm301, %v473, %v80
    %v476 = vunpack.c.l.s4 1983009808
    %v477 = vunpack.c.0.s8 %v476
    %v478 = vperm.slane %v474, %v477
    %v479 = vrot.slane %v83, 4
    %v480 = vsel %vm301, %v479, %v81
    %v482 = vunpack.c.l.s4 1983009808
    %v483 = vunpack.c.0.s8 %v482
    %v484 = vperm.slane %v480, %v483
    %v485 = vrot.slane %v472, 4
    %v486 = vsel %vm301, %v485, %v466
    %v488 = vunpack.c.l.s4 1934713408
    %v489 = vunpack.c.0.s8 %v488
    %v490 = vperm.slane %v486, %v489
    %v491 = vrot.slane %v484, 4
    %v492 = vsel %vm301, %v491, %v478
    %v494 = vunpack.c.l.s4 1934713408
    %v495 = vunpack.c.0.s8 %v494
    %v496 = vperm.slane %v492, %v495
    %v497 = vrot.slane %v496, 4
    %v498 = vsel %vm301, %v497, %v490
    %v499 = vrot.slane %v490, 4
    %v500 = vsel %vm301, %v496, %v499
    %v501 = vrot.slane %v86, 4
    %v502 = vsel %vm301, %v501, %v84
    %v504 = vunpack.c.l.s4 1983009808
    %v505 = vunpack.c.0.s8 %v504
    %v506 = vperm.slane %v502, %v505
    %v507 = vrot.slane %v87, 4
    %v508 = vsel %vm301, %v507, %v85
    %v510 = vunpack.c.l.s4 1983009808
    %v511 = vunpack.c.0.s8 %v510
    %v512 = vperm.slane %v508, %v511
    %v513 = vrot.slane %v90, 4
    %v514 = vsel %vm301, %v513, %v88
    %v516 = vunpack.c.l.s4 1983009808
    %v517 = vunpack.c.0.s8 %v516
    %v518 = vperm.slane %v514, %v517
    %v519 = vrot.slane %v91, 4
    %v520 = vsel %vm301, %v519, %v89
    %v522 = vunpack.c.l.s4 1983009808
    %v523 = vunpack.c.0.s8 %v522
    %v524 = vperm.slane %v520, %v523
    %v525 = vrot.slane %v512, 4
    %v526 = vsel %vm301, %v525, %v506
    %v528 = vunpack.c.l.s4 1934713408
    %v529 = vunpack.c.0.s8 %v528
    %v530 = vperm.slane %v526, %v529
    %v531 = vrot.slane %v524, 4
    %v532 = vsel %vm301, %v531, %v518
    %v534 = vunpack.c.l.s4 1934713408
    %v535 = vunpack.c.0.s8 %v534
    %v536 = vperm.slane %v532, %v535
    %v537 = vrot.slane %v536, 4
    %v538 = vsel %vm301, %v537, %v530
    %v539 = vrot.slane %v530, 4
    %v540 = vsel %vm301, %v536, %v539
    %v541 = vrot.slane %v94, 4
    %v542 = vsel %vm301, %v541, %v92
    %v544 = vunpack.c.l.s4 1983009808
    %v545 = vunpack.c.0.s8 %v544
    %v546 = vperm.slane %v542, %v545
    %v547 = vrot.slane %v95, 4
    %v548 = vsel %vm301, %v547, %v93
    %v550 = vunpack.c.l.s4 1983009808
    %v551 = vunpack.c.0.s8 %v550
    %v552 = vperm.slane %v548, %v551
    %v553 = vrot.slane %v98, 4
    %v554 = vsel %vm301, %v553, %v96
    %v556 = vunpack.c.l.s4 1983009808
    %v557 = vunpack.c.0.s8 %v556
    %v558 = vperm.slane %v554, %v557
    %v559 = vrot.slane %v99, 4
    %v560 = vsel %vm301, %v559, %v97
    %v562 = vunpack.c.l.s4 1983009808
    %v563 = vunpack.c.0.s8 %v562
    %v564 = vperm.slane %v560, %v563
    %v565 = vrot.slane %v552, 4
    %v566 = vsel %vm301, %v565, %v546
    %v568 = vunpack.c.l.s4 1934713408
    %v569 = vunpack.c.0.s8 %v568
    %v570 = vperm.slane %v566, %v569
    %v571 = vrot.slane %v564, 4
    %v572 = vsel %vm301, %v571, %v558
    %v574 = vunpack.c.l.s4 1934713408
    %v575 = vunpack.c.0.s8 %v574
    %v576 = vperm.slane %v572, %v575
    %v577 = vrot.slane %v576, 4
    %v578 = vsel %vm301, %v577, %v570
    %v579 = vrot.slane %v570, 4
    %v580 = vsel %vm301, %v576, %v579
    %v581 = vrot.slane %v102, 4
    %v582 = vsel %vm301, %v581, %v100
    %v584 = vunpack.c.l.s4 1983009808
    %v585 = vunpack.c.0.s8 %v584
    %v586 = vperm.slane %v582, %v585
    %v587 = vrot.slane %v103, 4
    %v588 = vsel %vm301, %v587, %v101
    %v590 = vunpack.c.l.s4 1983009808
    %v591 = vunpack.c.0.s8 %v590
    %v592 = vperm.slane %v588, %v591
    %v593 = vrot.slane %v106, 4
    %v594 = vsel %vm301, %v593, %v104
    %v596 = vunpack.c.l.s4 1983009808
    %v597 = vunpack.c.0.s8 %v596
    %v598 = vperm.slane %v594, %v597
    %v599 = vrot.slane %v107, 4
    %v600 = vsel %vm301, %v599, %v105
    %v602 = vunpack.c.l.s4 1983009808
    %v603 = vunpack.c.0.s8 %v602
    %v604 = vperm.slane %v600, %v603
    %v605 = vrot.slane %v592, 4
    %v606 = vsel %vm301, %v605, %v586
    %v608 = vunpack.c.l.s4 1934713408
    %v609 = vunpack.c.0.s8 %v608
    %v610 = vperm.slane %v606, %v609
    %v611 = vrot.slane %v604, 4
    %v612 = vsel %vm301, %v611, %v598
    %v614 = vunpack.c.l.s4 1934713408
    %v615 = vunpack.c.0.s8 %v614
    %v616 = vperm.slane %v612, %v615
    %v617 = vrot.slane %v616, 4
    %v618 = vsel %vm301, %v617, %v610
    %v619 = vrot.slane %v610, 4
    %v620 = vsel %vm301, %v616, %v619
    %v621 = vrot.slane %v110, 4
    %v622 = vsel %vm301, %v621, %v108
    %v624 = vunpack.c.l.s4 1983009808
    %v625 = vunpack.c.0.s8 %v624
    %v626 = vperm.slane %v622, %v625
    %v627 = vrot.slane %v111, 4
    %v628 = vsel %vm301, %v627, %v109
    %v630 = vunpack.c.l.s4 1983009808
    %v631 = vunpack.c.0.s8 %v630
    %v632 = vperm.slane %v628, %v631
    %v633 = vrot.slane %v114, 4
    %v634 = vsel %vm301, %v633, %v112
    %v636 = vunpack.c.l.s4 1983009808
    %v637 = vunpack.c.0.s8 %v636
    %v638 = vperm.slane %v634, %v637
    %v639 = vrot.slane %v115, 4
    %v640 = vsel %vm301, %v639, %v113
    %v642 = vunpack.c.l.s4 1983009808
    %v643 = vunpack.c.0.s8 %v642
    %v644 = vperm.slane %v640, %v643
    %v645 = vrot.slane %v632, 4
    %v646 = vsel %vm301, %v645, %v626
    %v648 = vunpack.c.l.s4 1934713408
    %v649 = vunpack.c.0.s8 %v648
    %v650 = vperm.slane %v646, %v649
    %v651 = vrot.slane %v644, 4
    %v652 = vsel %vm301, %v651, %v638
    %v654 = vunpack.c.l.s4 1934713408
    %v655 = vunpack.c.0.s8 %v654
    %v656 = vperm.slane %v652, %v655
    %v657 = vrot.slane %v656, 4
    %v658 = vsel %vm301, %v657, %v650
    %v659 = vrot.slane %v650, 4
    %v660 = vsel %vm301, %v656, %v659
    %v661 = vrot.slane %v118, 4
    %v662 = vsel %vm301, %v661, %v116
    %v664 = vunpack.c.l.s4 1983009808
    %v665 = vunpack.c.0.s8 %v664
    %v666 = vperm.slane %v662, %v665
    %v667 = vrot.slane %v119, 4
    %v668 = vsel %vm301, %v667, %v117
    %v670 = vunpack.c.l.s4 1983009808
    %v671 = vunpack.c.0.s8 %v670
    %v672 = vperm.slane %v668, %v671
    %v673 = vrot.slane %v122, 4
    %v674 = vsel %vm301, %v673, %v120
    %v676 = vunpack.c.l.s4 1983009808
    %v677 = vunpack.c.0.s8 %v676
    %v678 = vperm.slane %v674, %v677
    %v679 = vrot.slane %v123, 4
    %v680 = vsel %vm301, %v679, %v121
    %v682 = vunpack.c.l.s4 1983009808
    %v683 = vunpack.c.0.s8 %v682
    %v684 = vperm.slane %v680, %v683
    %v685 = vrot.slane %v672, 4
    %v686 = vsel %vm301, %v685, %v666
    %v688 = vunpack.c.l.s4 1934713408
    %v689 = vunpack.c.0.s8 %v688
    %v690 = vperm.slane %v686, %v689
    %v691 = vrot.slane %v684, 4
    %v692 = vsel %vm301, %v691, %v678
    %v694 = vunpack.c.l.s4 1934713408
    %v695 = vunpack.c.0.s8 %v694
    %v696 = vperm.slane %v692, %v695
    %v697 = vrot.slane %v696, 4
    %v698 = vsel %vm301, %v697, %v690
    %v699 = vrot.slane %v690, 4
    %v700 = vsel %vm301, %v696, %v699
    %v701 = vrot.slane %v126, 4
    %v702 = vsel %vm301, %v701, %v124
    %v704 = vunpack.c.l.s4 1983009808
    %v705 = vunpack.c.0.s8 %v704
    %v706 = vperm.slane %v702, %v705
    %v707 = vrot.slane %v127, 4
    %v708 = vsel %vm301, %v707, %v125
    %v710 = vunpack.c.l.s4 1983009808
    %v711 = vunpack.c.0.s8 %v710
    %v712 = vperm.slane %v708, %v711
    %v713 = vrot.slane %v130, 4
    %v714 = vsel %vm301, %v713, %v128
    %v716 = vunpack.c.l.s4 1983009808
    %v717 = vunpack.c.0.s8 %v716
    %v718 = vperm.slane %v714, %v717
    %v719 = vrot.slane %v131, 4
    %v720 = vsel %vm301, %v719, %v129
    %v722 = vunpack.c.l.s4 1983009808
    %v723 = vunpack.c.0.s8 %v722
    %v724 = vperm.slane %v720, %v723
    %v725 = vrot.slane %v712, 4
    %v726 = vsel %vm301, %v725, %v706
    %v728 = vunpack.c.l.s4 1934713408
    %v729 = vunpack.c.0.s8 %v728
    %v730 = vperm.slane %v726, %v729
    %v731 = vrot.slane %v724, 4
    %v732 = vsel %vm301, %v731, %v718
    %v734 = vunpack.c.l.s4 1934713408
    %v735 = vunpack.c.0.s8 %v734
    %v736 = vperm.slane %v732, %v735
    %v737 = vrot.slane %v736, 4
    %v738 = vsel %vm301, %v737, %v730
    %v739 = vrot.slane %v730, 4
    %v740 = vsel %vm301, %v736, %v739
    %v741 = vrot.slane %v134, 4
    %v742 = vsel %vm301, %v741, %v132
    %v744 = vunpack.c.l.s4 1983009808
    %v745 = vunpack.c.0.s8 %v744
    %v746 = vperm.slane %v742, %v745
    %v747 = vrot.slane %v135, 4
    %v748 = vsel %vm301, %v747, %v133
    %v750 = vunpack.c.l.s4 1983009808
    %v751 = vunpack.c.0.s8 %v750
    %v752 = vperm.slane %v748, %v751
    %v753 = vrot.slane %v138, 4
    %v754 = vsel %vm301, %v753, %v136
    %v756 = vunpack.c.l.s4 1983009808
    %v757 = vunpack.c.0.s8 %v756
    %v758 = vperm.slane %v754, %v757
    %v759 = vrot.slane %v139, 4
    %v760 = vsel %vm301, %v759, %v137
    %v762 = vunpack.c.l.s4 1983009808
    %v763 = vunpack.c.0.s8 %v762
    %v764 = vperm.slane %v760, %v763
    %v765 = vrot.slane %v752, 4
    %v766 = vsel %vm301, %v765, %v746
    %v768 = vunpack.c.l.s4 1934713408
    %v769 = vunpack.c.0.s8 %v768
    %v770 = vperm.slane %v766, %v769
    %v771 = vrot.slane %v764, 4
    %v772 = vsel %vm301, %v771, %v758
    %v774 = vunpack.c.l.s4 1934713408
    %v775 = vunpack.c.0.s8 %v774
    %v776 = vperm.slane %v772, %v775
    %v777 = vrot.slane %v776, 4
    %v778 = vsel %vm301, %v777, %v770
    %v779 = vrot.slane %v770, 4
    %v780 = vsel %vm301, %v776, %v779
    %v781 = vrot.slane %v142, 4
    %v782 = vsel %vm301, %v781, %v140
    %v784 = vunpack.c.l.s4 1983009808
    %v785 = vunpack.c.0.s8 %v784
    %v786 = vperm.slane %v782, %v785
    %v787 = vrot.slane %v143, 4
    %v788 = vsel %vm301, %v787, %v141
    %v790 = vunpack.c.l.s4 1983009808
    %v791 = vunpack.c.0.s8 %v790
    %v792 = vperm.slane %v788, %v791
    %v793 = vrot.slane %v146, 4
    %v794 = vsel %vm301, %v793, %v144
    %v796 = vunpack.c.l.s4 1983009808
    %v797 = vunpack.c.0.s8 %v796
    %v798 = vperm.slane %v794, %v797
    %v799 = vrot.slane %v147, 4
    %v800 = vsel %vm301, %v799, %v145
    %v802 = vunpack.c.l.s4 1983009808
    %v803 = vunpack.c.0.s8 %v802
    %v804 = vperm.slane %v800, %v803
    %v805 = vrot.slane %v792, 4
    %v806 = vsel %vm301, %v805, %v786
    %v808 = vunpack.c.l.s4 1934713408
    %v809 = vunpack.c.0.s8 %v808
    %v810 = vperm.slane %v806, %v809
    %v811 = vrot.slane %v804, 4
    %v812 = vsel %vm301, %v811, %v798
    %v814 = vunpack.c.l.s4 1934713408
    %v815 = vunpack.c.0.s8 %v814
    %v816 = vperm.slane %v812, %v815
    %v817 = vrot.slane %v816, 4
    %v818 = vsel %vm301, %v817, %v810
    %v819 = vrot.slane %v810, 4
    %v820 = vsel %vm301, %v816, %v819
    %v821 = vrot.slane %v150, 4
    %v822 = vsel %vm301, %v821, %v148
    %v824 = vunpack.c.l.s4 1983009808
    %v825 = vunpack.c.0.s8 %v824
    %v826 = vperm.slane %v822, %v825
    %v827 = vrot.slane %v151, 4
    %v828 = vsel %vm301, %v827, %v149
    %v830 = vunpack.c.l.s4 1983009808
    %v831 = vunpack.c.0.s8 %v830
    %v832 = vperm.slane %v828, %v831
    %v833 = vrot.slane %v154, 4
    %v834 = vsel %vm301, %v833, %v152
    %v836 = vunpack.c.l.s4 1983009808
    %v837 = vunpack.c.0.s8 %v836
    %v838 = vperm.slane %v834, %v837
    %v839 = vrot.slane %v155, 4
    %v840 = vsel %vm301, %v839, %v153
    %v842 = vunpack.c.l.s4 1983009808
    %v843 = vunpack.c.0.s8 %v842
    %v844 = vperm.slane %v840, %v843
    %v845 = vrot.slane %v832, 4
    %v846 = vsel %vm301, %v845, %v826
    %v848 = vunpack.c.l.s4 1934713408
    %v849 = vunpack.c.0.s8 %v848
    %v850 = vperm.slane %v846, %v849
    %v851 = vrot.slane %v844, 4
    %v852 = vsel %vm301, %v851, %v838
    %v854 = vunpack.c.l.s4 1934713408
    %v855 = vunpack.c.0.s8 %v854
    %v856 = vperm.slane %v852, %v855
    %v857 = vrot.slane %v856, 4
    %v858 = vsel %vm301, %v857, %v850
    %v859 = vrot.slane %v850, 4
    %v860 = vsel %vm301, %v856, %v859
    %v861 = vrot.slane %v158, 4
    %v862 = vsel %vm301, %v861, %v156
    %v864 = vunpack.c.l.s4 1983009808
    %v865 = vunpack.c.0.s8 %v864
    %v866 = vperm.slane %v862, %v865
    %v867 = vrot.slane %v159, 4
    %v868 = vsel %vm301, %v867, %v157
    %v870 = vunpack.c.l.s4 1983009808
    %v871 = vunpack.c.0.s8 %v870
    %v872 = vperm.slane %v868, %v871
    %v873 = vrot.slane %v162, 4
    %v874 = vsel %vm301, %v873, %v160
    %v876 = vunpack.c.l.s4 1983009808
    %v877 = vunpack.c.0.s8 %v876
    %v878 = vperm.slane %v874, %v877
    %v879 = vrot.slane %v163, 4
    %v880 = vsel %vm301, %v879, %v161
    %v882 = vunpack.c.l.s4 1983009808
    %v883 = vunpack.c.0.s8 %v882
    %v884 = vperm.slane %v880, %v883
    %v885 = vrot.slane %v872, 4
    %v886 = vsel %vm301, %v885, %v866
    %v888 = vunpack.c.l.s4 1934713408
    %v889 = vunpack.c.0.s8 %v888
    %v890 = vperm.slane %v886, %v889
    %v891 = vrot.slane %v884, 4
    %v892 = vsel %vm301, %v891, %v878
    %v894 = vunpack.c.l.s4 1934713408
    %v895 = vunpack.c.0.s8 %v894
    %v896 = vperm.slane %v892, %v895
    %v897 = vrot.slane %v896, 4
    %v898 = vsel %vm301, %v897, %v890
    %v899 = vrot.slane %v890, 4
    %v900 = vsel %vm301, %v896, %v899
    %v901 = vrot.slane %v166, 4
    %v902 = vsel %vm301, %v901, %v164
    %v904 = vunpack.c.l.s4 1983009808
    %v905 = vunpack.c.0.s8 %v904
    %v906 = vperm.slane %v902, %v905
    %v907 = vrot.slane %v167, 4
    %v908 = vsel %vm301, %v907, %v165
    %v910 = vunpack.c.l.s4 1983009808
    %v911 = vunpack.c.0.s8 %v910
    %v912 = vperm.slane %v908, %v911
    %v913 = vrot.slane %v170, 4
    %v914 = vsel %vm301, %v913, %v168
    %v916 = vunpack.c.l.s4 1983009808
    %v917 = vunpack.c.0.s8 %v916
    %v918 = vperm.slane %v914, %v917
    %v919 = vrot.slane %v171, 4
    %v920 = vsel %vm301, %v919, %v169
    %v922 = vunpack.c.l.s4 1983009808
    %v923 = vunpack.c.0.s8 %v922
    %v924 = vperm.slane %v920, %v923
    %v925 = vrot.slane %v912, 4
    %v926 = vsel %vm301, %v925, %v906
    %v928 = vunpack.c.l.s4 1934713408
    %v929 = vunpack.c.0.s8 %v928
    %v930 = vperm.slane %v926, %v929
    %v931 = vrot.slane %v924, 4
    %v932 = vsel %vm301, %v931, %v918
    %v934 = vunpack.c.l.s4 1934713408
    %v935 = vunpack.c.0.s8 %v934
    %v936 = vperm.slane %v932, %v935
    %v937 = vrot.slane %v936, 4
    %v938 = vsel %vm301, %v937, %v930
    %v939 = vrot.slane %v930, 4
    %v940 = vsel %vm301, %v936, %v939
    %v941 = vrot.slane %v174, 4
    %v942 = vsel %vm301, %v941, %v172
    %v944 = vunpack.c.l.s4 1983009808
    %v945 = vunpack.c.0.s8 %v944
    %v946 = vperm.slane %v942, %v945
    %v947 = vrot.slane %v175, 4
    %v948 = vsel %vm301, %v947, %v173
    %v950 = vunpack.c.l.s4 1983009808
    %v951 = vunpack.c.0.s8 %v950
    %v952 = vperm.slane %v948, %v951
    %v953 = vrot.slane %v178, 4
    %v954 = vsel %vm301, %v953, %v176
    %v956 = vunpack.c.l.s4 1983009808
    %v957 = vunpack.c.0.s8 %v956
    %v958 = vperm.slane %v954, %v957
    %v959 = vrot.slane %v179, 4
    %v960 = vsel %vm301, %v959, %v177
    %v962 = vunpack.c.l.s4 1983009808
    %v963 = vunpack.c.0.s8 %v962
    %v964 = vperm.slane %v960, %v963
    %v965 = vrot.slane %v952, 4
    %v966 = vsel %vm301, %v965, %v946
    %v968 = vunpack.c.l.s4 1934713408
    %v969 = vunpack.c.0.s8 %v968
    %v970 = vperm.slane %v966, %v969
    %v971 = vrot.slane %v964, 4
    %v972 = vsel %vm301, %v971, %v958
    %v974 = vunpack.c.l.s4 1934713408
    %v975 = vunpack.c.0.s8 %v974
    %v976 = vperm.slane %v972, %v975
    %v977 = vrot.slane %v976, 4
    %v978 = vsel %vm301, %v977, %v970
    %v979 = vrot.slane %v970, 4
    %v980 = vsel %vm301, %v976, %v979
    %v981 = vrot.slane %v182, 4
    %v982 = vsel %vm301, %v981, %v180
    %v984 = vunpack.c.l.s4 1983009808
    %v985 = vunpack.c.0.s8 %v984
    %v986 = vperm.slane %v982, %v985
    %v987 = vrot.slane %v183, 4
    %v988 = vsel %vm301, %v987, %v181
    %v990 = vunpack.c.l.s4 1983009808
    %v991 = vunpack.c.0.s8 %v990
    %v992 = vperm.slane %v988, %v991
    %v993 = vrot.slane %v186, 4
    %v994 = vsel %vm301, %v993, %v184
    %v996 = vunpack.c.l.s4 1983009808
    %v997 = vunpack.c.0.s8 %v996
    %v998 = vperm.slane %v994, %v997
    %v999 = vrot.slane %v187, 4
    %v1000 = vsel %vm301, %v999, %v185
    %v1002 = vunpack.c.l.s4 1983009808
    %v1003 = vunpack.c.0.s8 %v1002
    %v1004 = vperm.slane %v1000, %v1003
    %v1005 = vrot.slane %v992, 4
    %v1006 = vsel %vm301, %v1005, %v986
    %v1008 = vunpack.c.l.s4 1934713408
    %v1009 = vunpack.c.0.s8 %v1008
    %v1010 = vperm.slane %v1006, %v1009
    %v1011 = vrot.slane %v1004, 4
    %v1012 = vsel %vm301, %v1011, %v998
    %v1014 = vunpack.c.l.s4 1934713408
    %v1015 = vunpack.c.0.s8 %v1014
    %v1016 = vperm.slane %v1012, %v1015
    %v1017 = vrot.slane %v1016, 4
    %v1018 = vsel %vm301, %v1017, %v1010
    %v1019 = vrot.slane %v1010, 4
    %v1020 = vsel %vm301, %v1016, %v1019
    %v1021 = vrot.slane %v190, 4
    %v1022 = vsel %vm301, %v1021, %v188
    %v1024 = vunpack.c.l.s4 1983009808
    %v1025 = vunpack.c.0.s8 %v1024
    %v1026 = vperm.slane %v1022, %v1025
    %v1027 = vrot.slane %v191, 4
    %v1028 = vsel %vm301, %v1027, %v189
    %v1030 = vunpack.c.l.s4 1983009808
    %v1031 = vunpack.c.0.s8 %v1030
    %v1032 = vperm.slane %v1028, %v1031
    %v1033 = vrot.slane %v194, 4
    %v1034 = vsel %vm301, %v1033, %v192
    %v1036 = vunpack.c.l.s4 1983009808
    %v1037 = vunpack.c.0.s8 %v1036
    %v1038 = vperm.slane %v1034, %v1037
    %v1039 = vrot.slane %v195, 4
    %v1040 = vsel %vm301, %v1039, %v193
    %v1042 = vunpack.c.l.s4 1983009808
    %v1043 = vunpack.c.0.s8 %v1042
    %v1044 = vperm.slane %v1040, %v1043
    %v1045 = vrot.slane %v1032, 4
    %v1046 = vsel %vm301, %v1045, %v1026
    %v1048 = vunpack.c.l.s4 1934713408
    %v1049 = vunpack.c.0.s8 %v1048
    %v1050 = vperm.slane %v1046, %v1049
    %v1051 = vrot.slane %v1044, 4
    %v1052 = vsel %vm301, %v1051, %v1038
    %v1054 = vunpack.c.l.s4 1934713408
    %v1055 = vunpack.c.0.s8 %v1054
    %v1056 = vperm.slane %v1052, %v1055
    %v1057 = vrot.slane %v1056, 4
    %v1058 = vsel %vm301, %v1057, %v1050
    %v1059 = vrot.slane %v1050, 4
    %v1060 = vsel %vm301, %v1056, %v1059
    %v1061 = vrot.slane %v198, 4
    %v1062 = vsel %vm301, %v1061, %v196
    %v1064 = vunpack.c.l.s4 1983009808
    %v1065 = vunpack.c.0.s8 %v1064
    %v1066 = vperm.slane %v1062, %v1065
    %v1067 = vrot.slane %v199, 4
    %v1068 = vsel %vm301, %v1067, %v197
    %v1070 = vunpack.c.l.s4 1983009808
    %v1071 = vunpack.c.0.s8 %v1070
    %v1072 = vperm.slane %v1068, %v1071
    %v1073 = vrot.slane %v202, 4
    %v1074 = vsel %vm301, %v1073, %v200
    %v1076 = vunpack.c.l.s4 1983009808
    %v1077 = vunpack.c.0.s8 %v1076
    %v1078 = vperm.slane %v1074, %v1077
    %v1079 = vrot.slane %v203, 4
    %v1080 = vsel %vm301, %v1079, %v201
    %v1082 = vunpack.c.l.s4 1983009808
    %v1083 = vunpack.c.0.s8 %v1082
    %v1084 = vperm.slane %v1080, %v1083
    %v1085 = vrot.slane %v1072, 4
    %v1086 = vsel %vm301, %v1085, %v1066
    %v1088 = vunpack.c.l.s4 1934713408
    %v1089 = vunpack.c.0.s8 %v1088
    %v1090 = vperm.slane %v1086, %v1089
    %v1091 = vrot.slane %v1084, 4
    %v1092 = vsel %vm301, %v1091, %v1078
    %v1094 = vunpack.c.l.s4 1934713408
    %v1095 = vunpack.c.0.s8 %v1094
    %v1096 = vperm.slane %v1092, %v1095
    %v1097 = vrot.slane %v1096, 4
    %v1098 = vsel %vm301, %v1097, %v1090
    %v1099 = vrot.slane %v1090, 4
    %v1100 = vsel %vm301, %v1096, %v1099
    %v1101 = vrot.slane %v206, 4
    %v1102 = vsel %vm301, %v1101, %v204
    %v1104 = vunpack.c.l.s4 1983009808
    %v1105 = vunpack.c.0.s8 %v1104
    %v1106 = vperm.slane %v1102, %v1105
    %v1107 = vrot.slane %v207, 4
    %v1108 = vsel %vm301, %v1107, %v205
    %v1110 = vunpack.c.l.s4 1983009808
    %v1111 = vunpack.c.0.s8 %v1110
    %v1112 = vperm.slane %v1108, %v1111
    %v1113 = vrot.slane %v210, 4
    %v1114 = vsel %vm301, %v1113, %v208
    %v1116 = vunpack.c.l.s4 1983009808
    %v1117 = vunpack.c.0.s8 %v1116
    %v1118 = vperm.slane %v1114, %v1117
    %v1119 = vrot.slane %v211, 4
    %v1120 = vsel %vm301, %v1119, %v209
    %v1122 = vunpack.c.l.s4 1983009808
    %v1123 = vunpack.c.0.s8 %v1122
    %v1124 = vperm.slane %v1120, %v1123
    %v1125 = vrot.slane %v1112, 4
    %v1126 = vsel %vm301, %v1125, %v1106
    %v1128 = vunpack.c.l.s4 1934713408
    %v1129 = vunpack.c.0.s8 %v1128
    %v1130 = vperm.slane %v1126, %v1129
    %v1131 = vrot.slane %v1124, 4
    %v1132 = vsel %vm301, %v1131, %v1118
    %v1134 = vunpack.c.l.s4 1934713408
    %v1135 = vunpack.c.0.s8 %v1134
    %v1136 = vperm.slane %v1132, %v1135
    %v1137 = vrot.slane %v1136, 4
    %v1138 = vsel %vm301, %v1137, %v1130
    %v1139 = vrot.slane %v1130, 4
    %v1140 = vsel %vm301, %v1136, %v1139
    %v1141 = vrot.slane %v214, 4
    %v1142 = vsel %vm301, %v1141, %v212
    %v1144 = vunpack.c.l.s4 1983009808
    %v1145 = vunpack.c.0.s8 %v1144
    %v1146 = vperm.slane %v1142, %v1145
    %v1147 = vrot.slane %v215, 4
    %v1148 = vsel %vm301, %v1147, %v213
    %v1150 = vunpack.c.l.s4 1983009808
    %v1151 = vunpack.c.0.s8 %v1150
    %v1152 = vperm.slane %v1148, %v1151
    %v1153 = vrot.slane %v218, 4
    %v1154 = vsel %vm301, %v1153, %v216
    %v1156 = vunpack.c.l.s4 1983009808
    %v1157 = vunpack.c.0.s8 %v1156
    %v1158 = vperm.slane %v1154, %v1157
    %v1159 = vrot.slane %v219, 4
    %v1160 = vsel %vm301, %v1159, %v217
    %v1162 = vunpack.c.l.s4 1983009808
    %v1163 = vunpack.c.0.s8 %v1162
    %v1164 = vperm.slane %v1160, %v1163
    %v1165 = vrot.slane %v1152, 4
    %v1166 = vsel %vm301, %v1165, %v1146
    %v1168 = vunpack.c.l.s4 1934713408
    %v1169 = vunpack.c.0.s8 %v1168
    %v1170 = vperm.slane %v1166, %v1169
    %v1171 = vrot.slane %v1164, 4
    %v1172 = vsel %vm301, %v1171, %v1158
    %v1174 = vunpack.c.l.s4 1934713408
    %v1175 = vunpack.c.0.s8 %v1174
    %v1176 = vperm.slane %v1172, %v1175
    %v1177 = vrot.slane %v1176, 4
    %v1178 = vsel %vm301, %v1177, %v1170
    %v1179 = vrot.slane %v1170, 4
    %v1180 = vsel %vm301, %v1176, %v1179
    %v1181 = vrot.slane %v222, 4
    %v1182 = vsel %vm301, %v1181, %v220
    %v1184 = vunpack.c.l.s4 1983009808
    %v1185 = vunpack.c.0.s8 %v1184
    %v1186 = vperm.slane %v1182, %v1185
    %v1187 = vrot.slane %v223, 4
    %v1188 = vsel %vm301, %v1187, %v221
    %v1190 = vunpack.c.l.s4 1983009808
    %v1191 = vunpack.c.0.s8 %v1190
    %v1192 = vperm.slane %v1188, %v1191
    %v1193 = vrot.slane %v226, 4
    %v1194 = vsel %vm301, %v1193, %v224
    %v1196 = vunpack.c.l.s4 1983009808
    %v1197 = vunpack.c.0.s8 %v1196
    %v1198 = vperm.slane %v1194, %v1197
    %v1199 = vrot.slane %v227, 4
    %v1200 = vsel %vm301, %v1199, %v225
    %v1202 = vunpack.c.l.s4 1983009808
    %v1203 = vunpack.c.0.s8 %v1202
    %v1204 = vperm.slane %v1200, %v1203
    %v1205 = vrot.slane %v1192, 4
    %v1206 = vsel %vm301, %v1205, %v1186
    %v1208 = vunpack.c.l.s4 1934713408
    %v1209 = vunpack.c.0.s8 %v1208
    %v1210 = vperm.slane %v1206, %v1209
    %v1211 = vrot.slane %v1204, 4
    %v1212 = vsel %vm301, %v1211, %v1198
    %v1214 = vunpack.c.l.s4 1934713408
    %v1215 = vunpack.c.0.s8 %v1214
    %v1216 = vperm.slane %v1212, %v1215
    %v1217 = vrot.slane %v1216, 4
    %v1218 = vsel %vm301, %v1217, %v1210
    %v1219 = vrot.slane %v1210, 4
    %v1220 = vsel %vm301, %v1216, %v1219
    %v1221 = vrot.slane %v230, 4
    %v1222 = vsel %vm301, %v1221, %v228
    %v1224 = vunpack.c.l.s4 1983009808
    %v1225 = vunpack.c.0.s8 %v1224
    %v1226 = vperm.slane %v1222, %v1225
    %v1227 = vrot.slane %v231, 4
    %v1228 = vsel %vm301, %v1227, %v229
    %v1230 = vunpack.c.l.s4 1983009808
    %v1231 = vunpack.c.0.s8 %v1230
    %v1232 = vperm.slane %v1228, %v1231
    %v1233 = vrot.slane %v234, 4
    %v1234 = vsel %vm301, %v1233, %v232
    %v1236 = vunpack.c.l.s4 1983009808
    %v1237 = vunpack.c.0.s8 %v1236
    %v1238 = vperm.slane %v1234, %v1237
    %v1239 = vrot.slane %v235, 4
    %v1240 = vsel %vm301, %v1239, %v233
    %v1242 = vunpack.c.l.s4 1983009808
    %v1243 = vunpack.c.0.s8 %v1242
    %v1244 = vperm.slane %v1240, %v1243
    %v1245 = vrot.slane %v1232, 4
    %v1246 = vsel %vm301, %v1245, %v1226
    %v1248 = vunpack.c.l.s4 1934713408
    %v1249 = vunpack.c.0.s8 %v1248
    %v1250 = vperm.slane %v1246, %v1249
    %v1251 = vrot.slane %v1244, 4
    %v1252 = vsel %vm301, %v1251, %v1238
    %v1254 = vunpack.c.l.s4 1934713408
    %v1255 = vunpack.c.0.s8 %v1254
    %v1256 = vperm.slane %v1252, %v1255
    %v1257 = vrot.slane %v1256, 4
    %v1258 = vsel %vm301, %v1257, %v1250
    %v1259 = vrot.slane %v1250, 4
    %v1260 = vsel %vm301, %v1256, %v1259
    %v1261 = vrot.slane %v238, 4
    %v1262 = vsel %vm301, %v1261, %v236
    %v1264 = vunpack.c.l.s4 1983009808
    %v1265 = vunpack.c.0.s8 %v1264
    %v1266 = vperm.slane %v1262, %v1265
    %v1267 = vrot.slane %v239, 4
    %v1268 = vsel %vm301, %v1267, %v237
    %v1270 = vunpack.c.l.s4 1983009808
    %v1271 = vunpack.c.0.s8 %v1270
    %v1272 = vperm.slane %v1268, %v1271
    %v1273 = vrot.slane %v242, 4
    %v1274 = vsel %vm301, %v1273, %v240
    %v1276 = vunpack.c.l.s4 1983009808
    %v1277 = vunpack.c.0.s8 %v1276
    %v1278 = vperm.slane %v1274, %v1277
    %v1279 = vrot.slane %v243, 4
    %v1280 = vsel %vm301, %v1279, %v241
    %v1282 = vunpack.c.l.s4 1983009808
    %v1283 = vunpack.c.0.s8 %v1282
    %v1284 = vperm.slane %v1280, %v1283
    %v1285 = vrot.slane %v1272, 4
    %v1286 = vsel %vm301, %v1285, %v1266
    %v1288 = vunpack.c.l.s4 1934713408
    %v1289 = vunpack.c.0.s8 %v1288
    %v1290 = vperm.slane %v1286, %v1289
    %v1291 = vrot.slane %v1284, 4
    %v1292 = vsel %vm301, %v1291, %v1278
    %v1294 = vunpack.c.l.s4 1934713408
    %v1295 = vunpack.c.0.s8 %v1294
    %v1296 = vperm.slane %v1292, %v1295
    %v1297 = vrot.slane %v1296, 4
    %v1298 = vsel %vm301, %v1297, %v1290
    %v1299 = vrot.slane %v1290, 4
    %v1300 = vsel %vm301, %v1296, %v1299
    %v1301 = vrot.slane %v246, 4
    %v1302 = vsel %vm301, %v1301, %v244
    %v1304 = vunpack.c.l.s4 1983009808
    %v1305 = vunpack.c.0.s8 %v1304
    %v1306 = vperm.slane %v1302, %v1305
    %v1307 = vrot.slane %v247, 4
    %v1308 = vsel %vm301, %v1307, %v245
    %v1310 = vunpack.c.l.s4 1983009808
    %v1311 = vunpack.c.0.s8 %v1310
    %v1312 = vperm.slane %v1308, %v1311
    %v1313 = vrot.slane %v250, 4
    %v1314 = vsel %vm301, %v1313, %v248
    %v1316 = vunpack.c.l.s4 1983009808
    %v1317 = vunpack.c.0.s8 %v1316
    %v1318 = vperm.slane %v1314, %v1317
    %v1319 = vrot.slane %v251, 4
    %v1320 = vsel %vm301, %v1319, %v249
    %v1322 = vunpack.c.l.s4 1983009808
    %v1323 = vunpack.c.0.s8 %v1322
    %v1324 = vperm.slane %v1320, %v1323
    %v1325 = vrot.slane %v1312, 4
    %v1326 = vsel %vm301, %v1325, %v1306
    %v1328 = vunpack.c.l.s4 1934713408
    %v1329 = vunpack.c.0.s8 %v1328
    %v1330 = vperm.slane %v1326, %v1329
    %v1331 = vrot.slane %v1324, 4
    %v1332 = vsel %vm301, %v1331, %v1318
    %v1334 = vunpack.c.l.s4 1934713408
    %v1335 = vunpack.c.0.s8 %v1334
    %v1336 = vperm.slane %v1332, %v1335
    %v1337 = vrot.slane %v1336, 4
    %v1338 = vsel %vm301, %v1337, %v1330
    %v1339 = vrot.slane %v1330, 4
    %v1340 = vsel %vm301, %v1336, %v1339
    %v1341 = vrot.slane %v254, 4
    %v1342 = vsel %vm301, %v1341, %v252
    %v1344 = vunpack.c.l.s4 1983009808
    %v1345 = vunpack.c.0.s8 %v1344
    %v1346 = vperm.slane %v1342, %v1345
    %v1347 = vrot.slane %v255, 4
    %v1348 = vsel %vm301, %v1347, %v253
    %v1350 = vunpack.c.l.s4 1983009808
    %v1351 = vunpack.c.0.s8 %v1350
    %v1352 = vperm.slane %v1348, %v1351
    %v1353 = vrot.slane %v258, 4
    %v1354 = vsel %vm301, %v1353, %v256
    %v1356 = vunpack.c.l.s4 1983009808
    %v1357 = vunpack.c.0.s8 %v1356
    %v1358 = vperm.slane %v1354, %v1357
    %v1359 = vrot.slane %v259, 4
    %v1360 = vsel %vm301, %v1359, %v257
    %v1362 = vunpack.c.l.s4 1983009808
    %v1363 = vunpack.c.0.s8 %v1362
    %v1364 = vperm.slane %v1360, %v1363
    %v1365 = vrot.slane %v1352, 4
    %v1366 = vsel %vm301, %v1365, %v1346
    %v1368 = vunpack.c.l.s4 1934713408
    %v1369 = vunpack.c.0.s8 %v1368
    %v1370 = vperm.slane %v1366, %v1369
    %v1371 = vrot.slane %v1364, 4
    %v1372 = vsel %vm301, %v1371, %v1358
    %v1374 = vunpack.c.l.s4 1934713408
    %v1375 = vunpack.c.0.s8 %v1374
    %v1376 = vperm.slane %v1372, %v1375
    %v1377 = vrot.slane %v1376, 4
    %v1378 = vsel %vm301, %v1377, %v1370
    %v1379 = vrot.slane %v1370, 4
    %v1380 = vsel %vm301, %v1376, %v1379
    %v1381 = vrot.slane %v262, 4
    %v1382 = vsel %vm301, %v1381, %v260
    %v1384 = vunpack.c.l.s4 1983009808
    %v1385 = vunpack.c.0.s8 %v1384
    %v1386 = vperm.slane %v1382, %v1385
    %v1387 = vrot.slane %v263, 4
    %v1388 = vsel %vm301, %v1387, %v261
    %v1390 = vunpack.c.l.s4 1983009808
    %v1391 = vunpack.c.0.s8 %v1390
    %v1392 = vperm.slane %v1388, %v1391
    %v1393 = vrot.slane %v266, 4
    %v1394 = vsel %vm301, %v1393, %v264
    %v1396 = vunpack.c.l.s4 1983009808
    %v1397 = vunpack.c.0.s8 %v1396
    %v1398 = vperm.slane %v1394, %v1397
    %v1399 = vrot.slane %v267, 4
    %v1400 = vsel %vm301, %v1399, %v265
    %v1402 = vunpack.c.l.s4 1983009808
    %v1403 = vunpack.c.0.s8 %v1402
    %v1404 = vperm.slane %v1400, %v1403
    %v1405 = vrot.slane %v1392, 4
    %v1406 = vsel %vm301, %v1405, %v1386
    %v1408 = vunpack.c.l.s4 1934713408
    %v1409 = vunpack.c.0.s8 %v1408
    %v1410 = vperm.slane %v1406, %v1409
    %v1411 = vrot.slane %v1404, 4
    %v1412 = vsel %vm301, %v1411, %v1398
    %v1414 = vunpack.c.l.s4 1934713408
    %v1415 = vunpack.c.0.s8 %v1414
    %v1416 = vperm.slane %v1412, %v1415
    %v1417 = vrot.slane %v1416, 4
    %v1418 = vsel %vm301, %v1417, %v1410
    %v1419 = vrot.slane %v1410, 4
    %v1420 = vsel %vm301, %v1416, %v1419
    %v1421 = vrot.slane %v270, 4
    %v1422 = vsel %vm301, %v1421, %v268
    %v1424 = vunpack.c.l.s4 1983009808
    %v1425 = vunpack.c.0.s8 %v1424
    %v1426 = vperm.slane %v1422, %v1425
    %v1427 = vrot.slane %v271, 4
    %v1428 = vsel %vm301, %v1427, %v269
    %v1430 = vunpack.c.l.s4 1983009808
    %v1431 = vunpack.c.0.s8 %v1430
    %v1432 = vperm.slane %v1428, %v1431
    %v1433 = vrot.slane %v274, 4
    %v1434 = vsel %vm301, %v1433, %v272
    %v1436 = vunpack.c.l.s4 1983009808
    %v1437 = vunpack.c.0.s8 %v1436
    %v1438 = vperm.slane %v1434, %v1437
    %v1439 = vrot.slane %v275, 4
    %v1440 = vsel %vm301, %v1439, %v273
    %v1442 = vunpack.c.l.s4 1983009808
    %v1443 = vunpack.c.0.s8 %v1442
    %v1444 = vperm.slane %v1440, %v1443
    %v1445 = vrot.slane %v1432, 4
    %v1446 = vsel %vm301, %v1445, %v1426
    %v1448 = vunpack.c.l.s4 1934713408
    %v1449 = vunpack.c.0.s8 %v1448
    %v1450 = vperm.slane %v1446, %v1449
    %v1451 = vrot.slane %v1444, 4
    %v1452 = vsel %vm301, %v1451, %v1438
    %v1454 = vunpack.c.l.s4 1934713408
    %v1455 = vunpack.c.0.s8 %v1454
    %v1456 = vperm.slane %v1452, %v1455
    %v1457 = vrot.slane %v1456, 4
    %v1458 = vsel %vm301, %v1457, %v1450
    %v1459 = vrot.slane %v1450, 4
    %v1460 = vsel %vm301, %v1456, %v1459
    %v1461 = vrot.slane %v278, 4
    %v1462 = vsel %vm301, %v1461, %v276
    %v1464 = vunpack.c.l.s4 1983009808
    %v1465 = vunpack.c.0.s8 %v1464
    %v1466 = vperm.slane %v1462, %v1465
    %v1467 = vrot.slane %v279, 4
    %v1468 = vsel %vm301, %v1467, %v277
    %v1470 = vunpack.c.l.s4 1983009808
    %v1471 = vunpack.c.0.s8 %v1470
    %v1472 = vperm.slane %v1468, %v1471
    %v1473 = vrot.slane %v282, 4
    %v1474 = vsel %vm301, %v1473, %v280
    %v1476 = vunpack.c.l.s4 1983009808
    %v1477 = vunpack.c.0.s8 %v1476
    %v1478 = vperm.slane %v1474, %v1477
    %v1479 = vrot.slane %v283, 4
    %v1480 = vsel %vm301, %v1479, %v281
    %v1482 = vunpack.c.l.s4 1983009808
    %v1483 = vunpack.c.0.s8 %v1482
    %v1484 = vperm.slane %v1480, %v1483
    %v1485 = vrot.slane %v1472, 4
    %v1486 = vsel %vm301, %v1485, %v1466
    %v1488 = vunpack.c.l.s4 1934713408
    %v1489 = vunpack.c.0.s8 %v1488
    %v1490 = vperm.slane %v1486, %v1489
    %v1491 = vrot.slane %v1484, 4
    %v1492 = vsel %vm301, %v1491, %v1478
    %v1494 = vunpack.c.l.s4 1934713408
    %v1495 = vunpack.c.0.s8 %v1494
    %v1496 = vperm.slane %v1492, %v1495
    %v1497 = vrot.slane %v1496, 4
    %v1498 = vsel %vm301, %v1497, %v1490
    %v1499 = vrot.slane %v1490, 4
    %v1500 = vsel %vm301, %v1496, %v1499
    %v1501 = vrot.slane %v286, 4
    %v1502 = vsel %vm301, %v1501, %v284
    %v1504 = vunpack.c.l.s4 1983009808
    %v1505 = vunpack.c.0.s8 %v1504
    %v1506 = vperm.slane %v1502, %v1505
    %v1507 = vrot.slane %v287, 4
    %v1508 = vsel %vm301, %v1507, %v285
    %v1510 = vunpack.c.l.s4 1983009808
    %v1511 = vunpack.c.0.s8 %v1510
    %v1512 = vperm.slane %v1508, %v1511
    %v1513 = vrot.slane %v290, 4
    %v1514 = vsel %vm301, %v1513, %v288
    %v1516 = vunpack.c.l.s4 1983009808
    %v1517 = vunpack.c.0.s8 %v1516
    %v1518 = vperm.slane %v1514, %v1517
    %v1519 = vrot.slane %v291, 4
    %v1520 = vsel %vm301, %v1519, %v289
    %v1522 = vunpack.c.l.s4 1983009808
    %v1523 = vunpack.c.0.s8 %v1522
    %v1524 = vperm.slane %v1520, %v1523
    %v1525 = vrot.slane %v1512, 4
    %v1526 = vsel %vm301, %v1525, %v1506
    %v1528 = vunpack.c.l.s4 1934713408
    %v1529 = vunpack.c.0.s8 %v1528
    %v1530 = vperm.slane %v1526, %v1529
    %v1531 = vrot.slane %v1524, 4
    %v1532 = vsel %vm301, %v1531, %v1518
    %v1534 = vunpack.c.l.s4 1934713408
    %v1535 = vunpack.c.0.s8 %v1534
    %v1536 = vperm.slane %v1532, %v1535
    %v1537 = vrot.slane %v1536, 4
    %v1538 = vsel %vm301, %v1537, %v1530
    %v1539 = vrot.slane %v1530, 4
    %v1540 = vsel %vm301, %v1536, %v1539
    %v1541 = vrot.slane %v294, 4
    %v1542 = vsel %vm301, %v1541, %v292
    %v1544 = vunpack.c.l.s4 1983009808
    %v1545 = vunpack.c.0.s8 %v1544
    %v1546 = vperm.slane %v1542, %v1545
    %v1547 = vrot.slane %v295, 4
    %v1548 = vsel %vm301, %v1547, %v293
    %v1550 = vunpack.c.l.s4 1983009808
    %v1551 = vunpack.c.0.s8 %v1550
    %v1552 = vperm.slane %v1548, %v1551
    %v1553 = vrot.slane %v298, 4
    %v1554 = vsel %vm301, %v1553, %v296
    %v1556 = vunpack.c.l.s4 1983009808
    %v1557 = vunpack.c.0.s8 %v1556
    %v1558 = vperm.slane %v1554, %v1557
    %v1559 = vrot.slane %v299, 4
    %v1560 = vsel %vm301, %v1559, %v297
    %v1562 = vunpack.c.l.s4 1983009808
    %v1563 = vunpack.c.0.s8 %v1562
    %v1564 = vperm.slane %v1560, %v1563
    %v1565 = vrot.slane %v1552, 4
    %v1566 = vsel %vm301, %v1565, %v1546
    %v1568 = vunpack.c.l.s4 1934713408
    %v1569 = vunpack.c.0.s8 %v1568
    %v1570 = vperm.slane %v1566, %v1569
    %v1571 = vrot.slane %v1564, 4
    %v1572 = vsel %vm301, %v1571, %v1558
    %v1574 = vunpack.c.l.s4 1934713408
    %v1575 = vunpack.c.0.s8 %v1574
    %v1576 = vperm.slane %v1572, %v1575
    %v1577 = vrot.slane %v1576, 4
    %v1578 = vsel %vm301, %v1577, %v1570
    %v1579 = vrot.slane %v1570, 4
    %v1580 = vsel %vm301, %v1576, %v1579
    %v1581 = vld [vmem:[#allocation2] sm:$0x1]
    %v1582 = vld [vmem:[#allocation2 + $0x1] sm:$0x1]
    %vm1583 = vcmask 261120
    %v1585 = vsel %vm1583, %v1581, 0
    %v1588 = vsel %vm1583, %v338, 0
    %v1591 = vsel %vm1583, %v378, 0
    %v1594 = vsel %vm1583, %v418, 0
    %v1597 = vsel %vm1583, %v458, 0
    %v1600 = vsel %vm1583, %v498, 0
    %v1603 = vsel %vm1583, %v538, 0
    %v1606 = vsel %vm1583, %v578, 0
    %v1609 = vsel %vm1583, %v618, 0
    %v1612 = vsel %vm1583, %v658, 0
    %v1615 = vsel %vm1583, %v698, 0
    %v1618 = vsel %vm1583, %v738, 0
    %v1621 = vsel %vm1583, %v778, 0
    %v1624 = vsel %vm1583, %v818, 0
    %v1627 = vsel %vm1583, %v858, 0
    %v1630 = vsel %vm1583, %v898, 0
    %v1633 = vsel %vm1583, %v938, 0
    %v1636 = vsel %vm1583, %v978, 0
    %v1639 = vsel %vm1583, %v1018, 0
    %v1642 = vsel %vm1583, %v1058, 0
    %v1645 = vsel %vm1583, %v1098, 0
    %v1648 = vsel %vm1583, %v1138, 0
    %v1651 = vsel %vm1583, %v1178, 0
    %v1654 = vsel %vm1583, %v1218, 0
    %v1657 = vsel %vm1583, %v1258, 0
    %v1660 = vsel %vm1583, %v1298, 0
    %v1663 = vsel %vm1583, %v1338, 0
    %v1666 = vsel %vm1583, %v1378, 0
    %v1669 = vsel %vm1583, %v1418, 0
    %v1672 = vsel %vm1583, %v1458, 0
    %v1675 = vsel %vm1583, %v1498, 0
    %v1678 = vsel %vm1583, %v1538, 0
    %v1681 = vsel %vm1583, %v1578, 0
    %1683 = vmatpush.xpose.msra.mxu0 %v1633
    %1684 = vmatpush.xpose.msra.mxu0 %v1630
    %1685 = vmatpush.xpose.msra.mxu0 %v1627
    %1686 = vmatpush.xpose.msra.mxu0 %v1624
    %1687 = vmatpush.xpose.msra.mxu0 %v1621
    %1688 = vmatpush.xpose.msra.mxu0 %v1618
    %1689 = vmatpush.xpose.msra.mxu0 %v1615
    %1690 = vmatpush.xpose.msra.mxu0 %v1612
    %1691 = vmatpush.xpose.msra.mxu0 %v1609
    %1692 = vmatpush.xpose.msra.mxu0 %v1606
    %1693 = vmatpush.xpose.msra.mxu0 %v1603
    %1694 = vmatpush.xpose.msra.mxu0 %v1600
    %1695 = vmatpush.xpose.msra.mxu0 %v1597
    %1696 = vmatpush.xpose.msra.mxu0 %v1594
    %1697 = vmatpush.xpose.msra.mxu0 %v1591
    %1698 = vmatpush.xpose.msra.mxu0 %v1588
    %1699 = vmatmul.f32.gmra.mxu0 %v1585
    %v1700 = vpop.f32.mrf.mxu0
    %v1701 = vadd.f32 0.0, %v1700
    %1702 = vdwg.mxu0
    %1703 = vmatpush.xpose.msra.mxu0 %v1681
    %1704 = vmatpush.xpose.msra.mxu0 %v1678
    %1705 = vmatpush.xpose.msra.mxu0 %v1675
    %1706 = vmatpush.xpose.msra.mxu0 %v1672
    %1707 = vmatpush.xpose.msra.mxu0 %v1669
    %1708 = vmatpush.xpose.msra.mxu0 %v1666
    %1709 = vmatpush.xpose.msra.mxu0 %v1663
    %1710 = vmatpush.xpose.msra.mxu0 %v1660
    %1711 = vmatpush.xpose.msra.mxu0 %v1657
    %1712 = vmatpush.xpose.msra.mxu0 %v1654
    %1713 = vmatpush.xpose.msra.mxu0 %v1651
    %1714 = vmatpush.xpose.msra.mxu0 %v1648
    %1715 = vmatpush.xpose.msra.mxu0 %v1645
    %1716 = vmatpush.xpose.msra.mxu0 %v1642
    %1717 = vmatpush.xpose.msra.mxu0 %v1639
    %1718 = vmatpush.xpose.msra.mxu0 %v1636
    %1719 = vmatmul.f32.gmra.mxu0 %v1585
    %v1720 = vpop.f32.mrf.mxu0
    %v1721 = vadd.f32 0.0, %v1720
    %1722 = vdwg.mxu0
    %v1724 = vsel %vm1583, %v1582, 0
    %v1727 = vsel %vm1583, %v340, 0
    %v1730 = vsel %vm1583, %v380, 0
    %v1733 = vsel %vm1583, %v420, 0
    %v1736 = vsel %vm1583, %v460, 0
    %v1739 = vsel %vm1583, %v500, 0
    %v1742 = vsel %vm1583, %v540, 0
    %v1745 = vsel %vm1583, %v580, 0
    %v1748 = vsel %vm1583, %v620, 0
    %v1751 = vsel %vm1583, %v660, 0
    %v1754 = vsel %vm1583, %v700, 0
    %v1757 = vsel %vm1583, %v740, 0
    %v1760 = vsel %vm1583, %v780, 0
    %v1763 = vsel %vm1583, %v820, 0
    %v1766 = vsel %vm1583, %v860, 0
    %v1769 = vsel %vm1583, %v900, 0
    %v1772 = vsel %vm1583, %v940, 0
    %v1775 = vsel %vm1583, %v980, 0
    %v1778 = vsel %vm1583, %v1020, 0
    %v1781 = vsel %vm1583, %v1060, 0
    %v1784 = vsel %vm1583, %v1100, 0
    %v1787 = vsel %vm1583, %v1140, 0
    %v1790 = vsel %vm1583, %v1180, 0
    %v1793 = vsel %vm1583, %v1220, 0
    %v1796 = vsel %vm1583, %v1260, 0
    %v1799 = vsel %vm1583, %v1300, 0
    %v1802 = vsel %vm1583, %v1340, 0
    %v1805 = vsel %vm1583, %v1380, 0
    %v1808 = vsel %vm1583, %v1420, 0
    %v1811 = vsel %vm1583, %v1460, 0
    %v1814 = vsel %vm1583, %v1500, 0
    %v1817 = vsel %vm1583, %v1540, 0
    %v1820 = vsel %vm1583, %v1580, 0
    %1822 = vmatpush.xpose.msra.mxu0 %v1772
    %1823 = vmatpush.xpose.msra.mxu0 %v1769
    %1824 = vmatpush.xpose.msra.mxu0 %v1766
    %1825 = vmatpush.xpose.msra.mxu0 %v1763
    %1826 = vmatpush.xpose.msra.mxu0 %v1760
    %1827 = vmatpush.xpose.msra.mxu0 %v1757
    %1828 = vmatpush.xpose.msra.mxu0 %v1754
    %1829 = vmatpush.xpose.msra.mxu0 %v1751
    %1830 = vmatpush.xpose.msra.mxu0 %v1748
    %1831 = vmatpush.xpose.msra.mxu0 %v1745
    %1832 = vmatpush.xpose.msra.mxu0 %v1742
    %1833 = vmatpush.xpose.msra.mxu0 %v1739
    %1834 = vmatpush.xpose.msra.mxu0 %v1736
    %1835 = vmatpush.xpose.msra.mxu0 %v1733
    %1836 = vmatpush.xpose.msra.mxu0 %v1730
    %1837 = vmatpush.xpose.msra.mxu0 %v1727
    %1838 = vmatmul.f32.gmra.mxu0 %v1724
    %v1839 = vpop.f32.mrf.mxu0
    %v1840 = vadd.f32 0.0, %v1839
    %1841 = vdwg.mxu0
    %1842 = vmatpush.xpose.msra.mxu0 %v1820
    %1843 = vmatpush.xpose.msra.mxu0 %v1817
    %1844 = vmatpush.xpose.msra.mxu0 %v1814
    %1845 = vmatpush.xpose.msra.mxu0 %v1811
    %1846 = vmatpush.xpose.msra.mxu0 %v1808
    %1847 = vmatpush.xpose.msra.mxu0 %v1805
    %1848 = vmatpush.xpose.msra.mxu0 %v1802
    %1849 = vmatpush.xpose.msra.mxu0 %v1799
    %1850 = vmatpush.xpose.msra.mxu0 %v1796
    %1851 = vmatpush.xpose.msra.mxu0 %v1793
    %1852 = vmatpush.xpose.msra.mxu0 %v1790
    %1853 = vmatpush.xpose.msra.mxu0 %v1787
    %1854 = vmatpush.xpose.msra.mxu0 %v1784
    %1855 = vmatpush.xpose.msra.mxu0 %v1781
    %1856 = vmatpush.xpose.msra.mxu0 %v1778
    %1857 = vmatpush.xpose.msra.mxu0 %v1775
    %1858 = vmatmul.f32.gmra.mxu0 %v1724
    %v1859 = vpop.f32.mrf.mxu0
    %v1860 = vadd.f32 0.0, %v1859
    %1861 = vdwg.mxu0
    %s1862 = smul.u32 0, 256
    %v1867 = vrot.slane %v1721, 6
    %v1868 = vrot.slane %v1860, 6
    %vm1869 = vcmask 1041408
    %v1870 = vsel %vm1869, %v1701, %v1867
    %v1871 = vsel %vm1869, %v1840, %v1868
    %vm1872 = vcmask 1044484
    %v1873 = vsel %vm1872, %v1870, %v1870
    %vm1874 = vcmask 1046534
    %v1875 = vsel %vm1874, %v1870, %v1873
    %v1876 = vrot.slane %v1871, 7
    %vm1877 = vcmask 1041409
    %v1878 = vsel %vm1877, %v1876, %v1875
    %vm1879 = vcmask 1043459
    %v1880 = vsel %vm1879, %v1876, %v1878
    %vm1881 = vcmask 1045509
    %v1882 = vsel %vm1881, %v1876, %v1880
    %vm1883 = vcmask 1047559
    %v1884 = vsel %vm1883, %v1876, %v1882
    %s1886 = sshra.s32 %s1862, 7
    %s1887 = sand.u32 %s1862, 127
    %s1888 = smul.addr %s1886, 2
    %s1889 = scalar_lea.vmem [#allocation7], %s1888
    %1890 = vst [vmem:[%s1889] sm:$0xf] %v1884
    %p1891 = scmp.eq.s32.totalorder 0, 0
    // Predicated region
    $region18: #{tpu_custom_call.1} parent=1 // pred_check
      %p1892 = pneg %p1891
    $region19: #{tpu_custom_call.1} parent=1 // pred_check_branch
      %1894 = sbr.rel (%p1892) target = $region21
    $region20: #{tpu_custom_call.1} parent=1 // pred_region
      %v1895 = vld [vmem:[#allocation7] sm:$0xf]
      %v1896 = vlaneseq
      %v1897 = vand.u32 %v1896, 127
      %v1898 = vadd.s32 %v1897, 128
      %vm1899 = vcmp.lt.s32.totalorder %v1897, 8
      %vm1900 = vcmp.lt.s32.totalorder %v1898, 8
      %1902 = vst [vmem:[#allocation1] ss:$4 sm:$0xff] %v1895
      %v1903 = vld.sshfl [vmem:[#allocation1] sm:$0xff pattern:$0x73625140]
      %v1904 = vld.sshfl [vmem:[#allocation1 + $0x8] sm:$0xff pattern:$0x73625140]
      %v1907 = vsel %vm1899, %v1903, -1e+30
      %v1908 = vsel %vm1900, %v1904, -1e+30
      %v1909 = vsel %vm1869, %v1907, -inf
      %v1910 = vsel %vm1869, %v1908, -inf
      %v1911 = vmax.f32 %v1909, %v1910
      %1912 = vmax.xlane.f32.xlu0 %v1911
      %v1913 = vpop.xlane.xlu0 %1912
      %v1914 = vsub.f32 %v1907, %v1913
      %v1915 = vsub.f32 %v1908, %v1913
      %v1916 = vmul.f32 %v1914, 1.442695
      %v1917 = vpow.pop %v1916
      %v1918 = vmul.f32 %v1915, 1.442695
      %v1919 = vpow.pop %v1918
      %v1920 = vsel %vm1869, %v1917, 0.0
      %v1921 = vsel %vm1869, %v1919, 0.0
      %v1922 = vadd.f32 %v1920, %v1921
      %1923 = vadd.xlane.f32.xlu0 %v1922
      %v1924 = vpop.xlane.xlu0 %1923
      %v1925 = vrcp.pop %v1924
      %v1926 = vmul.f32 %v1924, %v1925
      %v1927 = vsub.f32 2.0, %v1926
      %v1928 = vmul.f32 %v1925, %v1927
      %v1929 = vmul.f32 %v1917, %v1928
      %v1930 = vmul.f32 %v1919, %v1928
      %v1933 = vrot.slane %v1930, 6
      %v1934 = vsel %vm1869, %v1929, %v1933
      %1936 = vst [vmem:[#allocation7] sm:$0xf] %v1934
    $region21: #{tpu_custom_call.1} parent=1 // pred_fallthru
      _
    // Predicated region
    $region22: #{tpu_custom_call.1} parent=1 // pred_check
      _
    $region23: #{tpu_custom_call.1} parent=1 // pred_check_branch
      %1938 = sbr.rel (0) target = $region25
    $region24: #{tpu_custom_call.1} parent=1 // pred_region
      %1940 = vsyncadd [#allocation4], 0
      %s1942 = sshll.u32 [#allocation7], 4
      %s1943 = int_to_ptr.vmem [resolvable:$true] %s1942
      %s1944 = sshll.u32 %s2, 4
      %s1945 = int_to_ptr.hbm [resolvable:$true] %s1944
      %1947 = dma.vmem_to_hbm [thread:$0]  %s1943, 64, %s1945, [#allocation4]
    $region25: #{tpu_custom_call.1} parent=1 // pred_fallthru
      _
    // Predicated region
    $region26: #{tpu_custom_call.1} parent=1 // pred_check
      _
    $region27: #{tpu_custom_call.1} parent=1 // pred_check_branch
      %1949 = sbr.rel (0) target = $region29
    $region28: #{tpu_custom_call.1} parent=1 // pred_region
      %1951 = dma.done [#allocation4], 64
    $region29: #{tpu_custom_call.1} parent=1 // pred_fallthru
      _
    %1952 = vsyncpa [#allocation3], 1
    %1953 = vsyncpa [#allocation6], 1
    %1954 = vsyncpa [#allocation4], 1

</llo_original>
